<compile_context>
chip_gen: v6e
topology: v6e:2x2x1
jax: 0.10.0
libtpu: 0.0.40
codegen_flags: <defaults>
</compile_context>

<pallas_src>
import numpy as np
import jax
import jax.numpy as jnp
from jax import lax
from jax.experimental import pallas as pl
from jax.experimental.pallas import tpu as pltpu

EPS = 1e-5         # torch.nn.GroupNorm default eps
NEG_SLOPE = 0.2    # F.leaky_relu(x, 0.2)


def _is_pow2(m):
    return (m & (m - 1)) == 0


def _vmod(v, m):
    # vector % constant; bitwise when possible (always true for the test shape)
    return (v & (m - 1)) if _is_pow2(m) else (v % m)


def _vdiv(v, m):
    # vector // constant; shift when possible (always true for the test shape)
    return (v >> (m.bit_length() - 1)) if _is_pow2(m) else (v // m)


def _make_resblock_kernel(C, H, W, G, B):
    """Builds the fused kernel (closure over static shape constants)."""
    HW = H * W
    L = B * HW          # lane extent per grid step (B images side by side)
    Cg = C // G
    inv_hw = 1.0 / HW

    def kernel(x_ref, affine_ref, w_ref, out_ref):
        x = x_ref[...].astype(jnp.float32)                       # (C, L)
        af = affine_ref[...].astype(jnp.float32)                 # (C, 4)
        g1, b1 = af[:, 0:1], af[:, 1:2]
        g2, b2 = af[:, 2:3], af[:, 3:4]
        w1 = w_ref[0].astype(jnp.float32)                        # (C, 9C)
        w2 = w_ref[1].astype(jnp.float32)

        # Per-tap validity masks, built in-kernel (no HBM mask input).
        pos = lax.broadcasted_iota(jnp.int32, (1, L), 1)
        ip = _vmod(pos, HW) if B > 1 else pos                    # intra-image idx
        xp = _vmod(ip, W)
        yp = _vdiv(ip, W)
        vx = [(xp + o >= 0) & (xp + o < W) for o in (-1, 0, 1)]  # 3 x (1, L) bool
        vy = [(yp + o >= 0) & (yp + o < H) for o in (-1, 0, 1)]

        # Group-averaging matrix for C > 32 (Cg > 1); cheap scale otherwise.
        # (Not exercised at C=4; avoids the (C,1)->(G,Cg) relayout path.)
        if Cg > 1:
            gi = _vdiv(lax.broadcasted_iota(jnp.int32, (C, C), 0), Cg)
            gj = _vdiv(lax.broadcasted_iota(jnp.int32, (C, C), 1), Cg)
            gmat = (gi == gj).astype(jnp.float32) * (1.0 / (Cg * HW))

        def gn_leaky(a, gamma, beta):
            # a: (C, L) f32. PyTorch GroupNorm (biased var) + leaky_relu(0.2),
            # stats taken per image via 128-aligned lane slices.
            parts = []
            for b in range(B):
                seg = a[:, b * HW:(b + 1) * HW]                  # (C, HW)
                s1 = jnp.sum(seg, axis=1, keepdims=True)         # (C, 1)
                mu = (s1 * inv_hw if Cg == 1 else
                      jnp.dot(gmat, s1, preferred_element_type=jnp.float32))
                d = seg - mu
                s2 = jnp.sum(d * d, axis=1, keepdims=True)       # (C, 1)
                var = (s2 * inv_hw if Cg == 1 else
                       jnp.dot(gmat, s2, preferred_element_type=jnp.float32))
                parts.append(d * lax.rsqrt(var + EPS) * gamma + beta)
            y = parts[0] if B == 1 else jnp.concatenate(parts, axis=1)
            return jnp.where(y > 0, y, NEG_SLOPE * y)

        def conv3x3(a, w_mat):
            # a: (C, L) f32, w_mat: (C, 9C) with column order (tap, cin).
            # "same" padding via static lane rotations (XLU) + boundary masks;
            # nine accumulated MXU matmuls (no im2col slab, no scratch).
            acc = None
            for dy in range(3):
                for dx in range(3):
                    t = dy * 3 + dx
                    off = (dy - 1) * W + (dx - 1)
                    if off == 0:                                  # center tap
                        tap = a
                    else:
                        rolled = pltpu.roll(a, shift=(-off) % L, axis=1)
                        tap = jnp.where(vy[dy] & vx[dx], rolled, 0.0)
                    p = jnp.dot(w_mat[:, t * C:(t + 1) * C], tap,
                                preferred_element_type=jnp.float32)
                    acc = p if acc is None else acc + p
            return acc

        h = gn_leaky(x, g1, b1)                                   # residual skip
        c1 = conv3x3(h, w1)
        h2 = gn_leaky(c1, g2, b2)
        c2 = conv3x3(h2, w2)
        out_ref[...] = (h + c2).astype(out_ref.dtype)             # skip add

    return kernel


def res_block_forward(x, params):
    """ResBlock forward. x: (N, C, H, W) NCHW (PyTorch convention)."""
    N, C, H, W = x.shape
    Cout = params["w1"].shape[0]
    assert Cout == C, "residual ResBlock without convskip requires inputs==outputs"
    G = min(C, 32)
    HW = H * W

    # Images per grid step: keep >= 2 grid steps when possible (both v7x
    # TensorCores busy) while batching the rest along lanes.  A partial block's
    # lane extent must be a multiple of 128.
    steps = 2 if (N >= 2 and N % 2 == 0 and ((N // 2) * HW) % 128 == 0) else 1
    B = N // steps

    kernel = _make_resblock_kernel(C, H, W, G, B)

    # Channels on sublanes, (image, pixel) on lanes: (C, N*HW).
    x_cl = jnp.transpose(x.reshape(N, C, HW), (1, 0, 2)).reshape(C, N * HW)

    # Conv weights as (Cout, 9*Cin); column order (tap, cin).  Packed together.
    w1 = jnp.transpose(params["w1"], (0, 2, 3, 1)).reshape(C, 9 * C)
    w2 = jnp.transpose(params["w2"], (0, 2, 3, 1)).reshape(C, 9 * C)
    w_pk = jnp.stack([w1, w2], axis=0)                            # (2, C, 9C)
    affine = jnp.stack([params["gamma1"], params["beta1"],
                        params["gamma2"], params["beta2"]], axis=1)  # (C, 4)

    cost = pl.CostEstimate(
        flops=N * (2 * 2 * 9 * C * C * HW + 16 * C * HW),
        transcendentals=2 * N * C,
        bytes_accessed=int(x.dtype.itemsize) * 2 * N * C * HW
                       + 4 * (2 * 9 * C * C + 4 * C),
    )

    out = pl.pallas_call(
        kernel,
        out_shape=jax.ShapeDtypeStruct((C, N * HW), x.dtype),
        grid=(steps,),
        in_specs=[
            pl.BlockSpec((C, B * HW), lambda n: (0, n)),          # activations
            pl.BlockSpec((C, 4), lambda n: (0, 0)),               # gamma/beta
            pl.BlockSpec((2, C, 9 * C), lambda n: (0, 0, 0)),     # w1 & w2
        ],
        out_specs=pl.BlockSpec((C, B * HW), lambda n: (0, n)),
        compiler_params=pltpu.CompilerParams(
            dimension_semantics=("parallel",)),
        cost_estimate=cost,
    )(x_cl, affine, w_pk)

    return jnp.transpose(out.reshape(C, N, H, W), (1, 0, 2, 3))


# ----------------------------------------------------------------------------
# Pure-JAX reference for verification
# ----------------------------------------------------------------------------
def _ref_forward(x, params):
    def gn(x, gamma, beta, groups):
        N, C, H, W = x.shape
        xg = x.reshape(N, groups, -1)
        mean = xg.mean(axis=2, keepdims=True)
        var = ((xg - mean) ** 2).mean(axis=2, keepdims=True)
        y = ((xg - mean) / jnp.sqrt(var + EPS)).reshape(N, C, H, W)
        return y * gamma[None, :, None, None] + beta[None, :, None, None]

    def lrelu(x):
        return jnp.where(x > 0, x, NEG_SLOPE * x)

    def conv(x, w):
        return lax.conv_general_dilated(
            x, w, (1, 1), ((1, 1), (1, 1)),
            dimension_numbers=("NCHW", "OIHW", "NCHW"))

    C_in = x.shape[1]
    C_out = params["w1"].shape[0]
    h = lrelu(gn(x, params["gamma1"], params["beta1"], min(C_in, 32)))
    x_skip = h
    h2 = lrelu(gn(conv(h, params["w1"]), params["gamma2"], params["beta2"],
                  min(C_out, 32)))
    return x_skip + conv(h2, params["w2"])


if __name__ == "__main__":
    N, C, H, W = 2, 4, 16, 16          # inputs == outputs == 4
    key = jax.random.PRNGKey(0)
    keys = jax.random.split(key, 7)
    x = jax.random.normal(keys[0], (N, C, H, W), jnp.float32)
    params = {
        "gamma1": 1.0 + 0.1 * jax.random.normal(keys[1], (C,), jnp.float32),
        "beta1": 0.1 * jax.random.normal(keys[2], (C,), jnp.float32),
        "w1": 0.1 * jax.random.normal(keys[3], (C, C, 3, 3), jnp.float32),
        "gamma2": 1.0 + 0.1 * jax.random.normal(keys[4], (C,), jnp.float32),
        "beta2": 0.1 * jax.random.normal(keys[5], (C,), jnp.float32),
        "w2": 0.1 * jax.random.normal(keys[6], (C, C, 3, 3), jnp.float32),
    }

    out = jax.block_until_ready(res_block_forward(x, params))
    ref = jax.block_until_ready(_ref_forward(x, params))

    assert out.shape == (N, C, H, W)
    np.testing.assert_allclose(np.asarray(out), np.asarray(ref),
                               rtol=1e-4, atol=1e-4)
    print("KERNEL_OK")
</pallas_src>

<mosaic_0001>
module attributes {stable_mosaic.version = 11 : i64} {
  func.func @kernel(%arg0: i32, %arg1: memref<4x256xf32, #tpu.memory_space<vmem>>, %arg2: memref<4x4xf32, #tpu.memory_space<vmem>>, %arg3: memref<2x4x36xf32, #tpu.memory_space<vmem>>, %arg4: memref<4x256xf32, #tpu.memory_space<vmem>>) attributes {dimension_semantics = [#tpu.dimension_semantics<parallel>], iteration_bounds = array<i64: 2>, scalar_prefetch = 0 : i64, scratch_operands = 0 : i64, tpu.core_type = #tpu.core_type<tc>, window_params = [{transform_indices = @transform_0, window_bounds = array<i64: 4, 256>}, {pipeline_mode = #tpu.pipeline_mode<synchronous>, transform_indices = @transform_1, window_bounds = array<i64: 4, 4>}, {pipeline_mode = #tpu.pipeline_mode<synchronous>, transform_indices = @transform_2, window_bounds = array<i64: 2, 4, 36>}, {transform_indices = @transform_3, window_bounds = array<i64: 4, 256>}]} {
    %c0 = arith.constant 0 : index
    %c0_0 = arith.constant 0 : index
    %0 = vector.load %arg1[%c0, %c0_0] : memref<4x256xf32, #tpu.memory_space<vmem>>, vector<4x256xf32>
    %c0_1 = arith.constant 0 : index
    %c0_2 = arith.constant 0 : index
    %1 = vector.load %arg2[%c0_1, %c0_2] : memref<4x4xf32, #tpu.memory_space<vmem>>, vector<4x4xf32>
    %2 = vector.extract_strided_slice %1 {offsets = [0, 0], sizes = [4, 1], strides = [1, 1]} : vector<4x4xf32> to vector<4x1xf32>
    %3 = vector.extract_strided_slice %1 {offsets = [0, 1], sizes = [4, 1], strides = [1, 1]} : vector<4x4xf32> to vector<4x1xf32>
    %4 = vector.extract_strided_slice %1 {offsets = [0, 2], sizes = [4, 1], strides = [1, 1]} : vector<4x4xf32> to vector<4x1xf32>
    %5 = vector.extract_strided_slice %1 {offsets = [0, 3], sizes = [4, 1], strides = [1, 1]} : vector<4x4xf32> to vector<4x1xf32>
    %c0_3 = arith.constant 0 : index
    %c0_4 = arith.constant 0 : index
    %c0_5 = arith.constant 0 : index
    %6 = vector.load %arg3[%c0_3, %c0_4, %c0_5] : memref<2x4x36xf32, #tpu.memory_space<vmem>>, vector<1x4x36xf32>
    %7 = vector.shape_cast %6 : vector<1x4x36xf32> to vector<4x36xf32>
    %c1 = arith.constant 1 : index
    %c0_6 = arith.constant 0 : index
    %c0_7 = arith.constant 0 : index
    %8 = vector.load %arg3[%c1, %c0_6, %c0_7] : memref<2x4x36xf32, #tpu.memory_space<vmem>>, vector<1x4x36xf32>
    %9 = vector.shape_cast %8 : vector<1x4x36xf32> to vector<4x36xf32>
    %10 = tpu.iota {dimensions = array<i32: 1>} : vector<1x256xi32>
    %c15_i32 = arith.constant 15 : i32
    %11 = vector.broadcast %c15_i32 : i32 to vector<1x256xi32>
    %12 = arith.andi %10, %11 : vector<1x256xi32>
    %c4_i32 = arith.constant 4 : i32
    %13 = vector.broadcast %c4_i32 : i32 to vector<1x256xi32>
    %14 = arith.shrsi %10, %13 : vector<1x256xi32>
    %c-1_i32 = arith.constant -1 : i32
    %15 = vector.broadcast %c-1_i32 : i32 to vector<1x256xi32>
    %16 = arith.addi %12, %15 : vector<1x256xi32>
    %c0_i32 = arith.constant 0 : i32
    %17 = vector.broadcast %c0_i32 : i32 to vector<1x256xi32>
    %18 = arith.cmpi sge, %16, %17 : vector<1x256xi32>
    %c-1_i32_8 = arith.constant -1 : i32
    %19 = vector.broadcast %c-1_i32_8 : i32 to vector<1x256xi32>
    %20 = arith.addi %12, %19 : vector<1x256xi32>
    %c16_i32 = arith.constant 16 : i32
    %21 = vector.broadcast %c16_i32 : i32 to vector<1x256xi32>
    %22 = arith.cmpi slt, %20, %21 : vector<1x256xi32>
    %23 = arith.andi %18, %22 : vector<1x256xi1>
    %c0_i32_9 = arith.constant 0 : i32
    %24 = vector.broadcast %c0_i32_9 : i32 to vector<1x256xi32>
    %25 = arith.addi %12, %24 : vector<1x256xi32>
    %c0_i32_10 = arith.constant 0 : i32
    %26 = vector.broadcast %c0_i32_10 : i32 to vector<1x256xi32>
    %27 = arith.cmpi sge, %25, %26 : vector<1x256xi32>
    %c0_i32_11 = arith.constant 0 : i32
    %28 = vector.broadcast %c0_i32_11 : i32 to vector<1x256xi32>
    %29 = arith.addi %12, %28 : vector<1x256xi32>
    %c16_i32_12 = arith.constant 16 : i32
    %30 = vector.broadcast %c16_i32_12 : i32 to vector<1x256xi32>
    %31 = arith.cmpi slt, %29, %30 : vector<1x256xi32>
    %32 = arith.andi %27, %31 : vector<1x256xi1>
    %c1_i32 = arith.constant 1 : i32
    %33 = vector.broadcast %c1_i32 : i32 to vector<1x256xi32>
    %34 = arith.addi %12, %33 : vector<1x256xi32>
    %c0_i32_13 = arith.constant 0 : i32
    %35 = vector.broadcast %c0_i32_13 : i32 to vector<1x256xi32>
    %36 = arith.cmpi sge, %34, %35 : vector<1x256xi32>
    %c1_i32_14 = arith.constant 1 : i32
    %37 = vector.broadcast %c1_i32_14 : i32 to vector<1x256xi32>
    %38 = arith.addi %12, %37 : vector<1x256xi32>
    %c16_i32_15 = arith.constant 16 : i32
    %39 = vector.broadcast %c16_i32_15 : i32 to vector<1x256xi32>
    %40 = arith.cmpi slt, %38, %39 : vector<1x256xi32>
    %41 = arith.andi %36, %40 : vector<1x256xi1>
    %c-1_i32_16 = arith.constant -1 : i32
    %42 = vector.broadcast %c-1_i32_16 : i32 to vector<1x256xi32>
    %43 = arith.addi %14, %42 : vector<1x256xi32>
    %c0_i32_17 = arith.constant 0 : i32
    %44 = vector.broadcast %c0_i32_17 : i32 to vector<1x256xi32>
    %45 = arith.cmpi sge, %43, %44 : vector<1x256xi32>
    %c-1_i32_18 = arith.constant -1 : i32
    %46 = vector.broadcast %c-1_i32_18 : i32 to vector<1x256xi32>
    %47 = arith.addi %14, %46 : vector<1x256xi32>
    %c16_i32_19 = arith.constant 16 : i32
    %48 = vector.broadcast %c16_i32_19 : i32 to vector<1x256xi32>
    %49 = arith.cmpi slt, %47, %48 : vector<1x256xi32>
    %50 = arith.andi %45, %49 : vector<1x256xi1>
    %c0_i32_20 = arith.constant 0 : i32
    %51 = vector.broadcast %c0_i32_20 : i32 to vector<1x256xi32>
    %52 = arith.addi %14, %51 : vector<1x256xi32>
    %c0_i32_21 = arith.constant 0 : i32
    %53 = vector.broadcast %c0_i32_21 : i32 to vector<1x256xi32>
    %54 = arith.cmpi sge, %52, %53 : vector<1x256xi32>
    %c0_i32_22 = arith.constant 0 : i32
    %55 = vector.broadcast %c0_i32_22 : i32 to vector<1x256xi32>
    %56 = arith.addi %14, %55 : vector<1x256xi32>
    %c16_i32_23 = arith.constant 16 : i32
    %57 = vector.broadcast %c16_i32_23 : i32 to vector<1x256xi32>
    %58 = arith.cmpi slt, %56, %57 : vector<1x256xi32>
    %59 = arith.andi %54, %58 : vector<1x256xi1>
    %c1_i32_24 = arith.constant 1 : i32
    %60 = vector.broadcast %c1_i32_24 : i32 to vector<1x256xi32>
    %61 = arith.addi %14, %60 : vector<1x256xi32>
    %c0_i32_25 = arith.constant 0 : i32
    %62 = vector.broadcast %c0_i32_25 : i32 to vector<1x256xi32>
    %63 = arith.cmpi sge, %61, %62 : vector<1x256xi32>
    %c1_i32_26 = arith.constant 1 : i32
    %64 = vector.broadcast %c1_i32_26 : i32 to vector<1x256xi32>
    %65 = arith.addi %14, %64 : vector<1x256xi32>
    %c16_i32_27 = arith.constant 16 : i32
    %66 = vector.broadcast %c16_i32_27 : i32 to vector<1x256xi32>
    %67 = arith.cmpi slt, %65, %66 : vector<1x256xi32>
    %68 = arith.andi %63, %67 : vector<1x256xi1>
    %cst = arith.constant dense<0.000000e+00> : vector<4xf32>
    %69 = vector.multi_reduction <add>, %0, %cst [1] : vector<4x256xf32> to vector<4xf32>
    %70 = vector.shape_cast %69 : vector<4xf32> to vector<4x1xf32>
    %cst_28 = arith.constant 3.906250e-03 : f32
    %71 = vector.broadcast %cst_28 : f32 to vector<4x1xf32>
    %72 = arith.mulf %70, %71 : vector<4x1xf32>
    %73 = vector.broadcast %72 : vector<4x1xf32> to vector<4x256xf32>
    %74 = arith.subf %0, %73 : vector<4x256xf32>
    %75 = arith.mulf %74, %74 : vector<4x256xf32>
    %cst_29 = arith.constant dense<0.000000e+00> : vector<4xf32>
    %76 = vector.multi_reduction <add>, %75, %cst_29 [1] : vector<4x256xf32> to vector<4xf32>
    %77 = vector.shape_cast %76 : vector<4xf32> to vector<4x1xf32>
    %cst_30 = arith.constant 3.906250e-03 : f32
    %78 = vector.broadcast %cst_30 : f32 to vector<4x1xf32>
    %79 = arith.mulf %77, %78 : vector<4x1xf32>
    %cst_31 = arith.constant 9.99999974E-6 : f32
    %80 = vector.broadcast %cst_31 : f32 to vector<4x1xf32>
    %81 = arith.addf %79, %80 : vector<4x1xf32>
    %82 = math.rsqrt %81 : vector<4x1xf32>
    %83 = vector.broadcast %82 : vector<4x1xf32> to vector<4x256xf32>
    %84 = arith.mulf %74, %83 : vector<4x256xf32>
    %85 = vector.broadcast %2 : vector<4x1xf32> to vector<4x256xf32>
    %86 = arith.mulf %84, %85 : vector<4x256xf32>
    %87 = vector.broadcast %3 : vector<4x1xf32> to vector<4x256xf32>
    %88 = arith.addf %86, %87 : vector<4x256xf32>
    %cst_32 = arith.constant 0.000000e+00 : f32
    %89 = vector.broadcast %cst_32 : f32 to vector<4x256xf32>
    %90 = arith.cmpf ogt, %88, %89 : vector<4x256xf32>
    %cst_33 = arith.constant 2.000000e-01 : f32
    %91 = vector.broadcast %cst_33 : f32 to vector<4x256xf32>
    %92 = arith.mulf %91, %88 : vector<4x256xf32>
    %93 = arith.select %90, %88, %92 : vector<4x256xi1>, vector<4x256xf32>
    %c17_i32 = arith.constant 17 : i32
    %94 = tpu.dynamic_rotate %93 by %c17_i32 dim 1 : vector<4x256xf32>, i32 -> vector<4x256xf32>
    %95 = arith.andi %50, %23 : vector<1x256xi1>
    %cst_34 = arith.constant 0.000000e+00 : f32
    %96 = vector.shape_cast %95 : vector<1x256xi1> to vector<1x256xi1>
    %97 = vector.broadcast %96 : vector<1x256xi1> to vector<4x256xi1>
    %98 = vector.broadcast %cst_34 : f32 to vector<4x256xf32>
    %99 = arith.select %97, %94, %98 : vector<4x256xi1>, vector<4x256xf32>
    %100 = vector.extract_strided_slice %7 {offsets = [0, 0], sizes = [4, 4], strides = [1, 1]} : vector<4x36xf32> to vector<4x4xf32>
    %cst_35 = arith.constant dense<0.000000e+00> : vector<4x256xf32>
    %101 = tpu.matmul %100, %99, %cst_35 {dimension_numbers = #tpu.dot_dimension_numbers<[1], [0], [0], [1], [0, 0, 1, 1], [], []>} : vector<4x4xf32>, vector<4x256xf32>, vector<4x256xf32> -> vector<4x256xf32>
    %c16_i32_36 = arith.constant 16 : i32
    %102 = tpu.dynamic_rotate %93 by %c16_i32_36 dim 1 : vector<4x256xf32>, i32 -> vector<4x256xf32>
    %103 = arith.andi %50, %32 : vector<1x256xi1>
    %cst_37 = arith.constant 0.000000e+00 : f32
    %104 = vector.shape_cast %103 : vector<1x256xi1> to vector<1x256xi1>
    %105 = vector.broadcast %104 : vector<1x256xi1> to vector<4x256xi1>
    %106 = vector.broadcast %cst_37 : f32 to vector<4x256xf32>
    %107 = arith.select %105, %102, %106 : vector<4x256xi1>, vector<4x256xf32>
    %108 = vector.extract_strided_slice %7 {offsets = [0, 4], sizes = [4, 4], strides = [1, 1]} : vector<4x36xf32> to vector<4x4xf32>
    %cst_38 = arith.constant dense<0.000000e+00> : vector<4x256xf32>
    %109 = tpu.matmul %108, %107, %cst_38 {dimension_numbers = #tpu.dot_dimension_numbers<[1], [0], [0], [1], [0, 0, 1, 1], [], []>} : vector<4x4xf32>, vector<4x256xf32>, vector<4x256xf32> -> vector<4x256xf32>
    %110 = arith.addf %101, %109 : vector<4x256xf32>
    %c15_i32_39 = arith.constant 15 : i32
    %111 = tpu.dynamic_rotate %93 by %c15_i32_39 dim 1 : vector<4x256xf32>, i32 -> vector<4x256xf32>
    %112 = arith.andi %50, %41 : vector<1x256xi1>
    %cst_40 = arith.constant 0.000000e+00 : f32
    %113 = vector.shape_cast %112 : vector<1x256xi1> to vector<1x256xi1>
    %114 = vector.broadcast %113 : vector<1x256xi1> to vector<4x256xi1>
    %115 = vector.broadcast %cst_40 : f32 to vector<4x256xf32>
    %116 = arith.select %114, %111, %115 : vector<4x256xi1>, vector<4x256xf32>
    %117 = vector.extract_strided_slice %7 {offsets = [0, 8], sizes = [4, 4], strides = [1, 1]} : vector<4x36xf32> to vector<4x4xf32>
    %cst_41 = arith.constant dense<0.000000e+00> : vector<4x256xf32>
    %118 = tpu.matmul %117, %116, %cst_41 {dimension_numbers = #tpu.dot_dimension_numbers<[1], [0], [0], [1], [0, 0, 1, 1], [], []>} : vector<4x4xf32>, vector<4x256xf32>, vector<4x256xf32> -> vector<4x256xf32>
    %119 = arith.addf %110, %118 : vector<4x256xf32>
    %c1_i32_42 = arith.constant 1 : i32
    %120 = tpu.dynamic_rotate %93 by %c1_i32_42 dim 1 : vector<4x256xf32>, i32 -> vector<4x256xf32>
    %121 = arith.andi %59, %23 : vector<1x256xi1>
    %cst_43 = arith.constant 0.000000e+00 : f32
    %122 = vector.shape_cast %121 : vector<1x256xi1> to vector<1x256xi1>
    %123 = vector.broadcast %122 : vector<1x256xi1> to vector<4x256xi1>
    %124 = vector.broadcast %cst_43 : f32 to vector<4x256xf32>
    %125 = arith.select %123, %120, %124 : vector<4x256xi1>, vector<4x256xf32>
    %126 = vector.extract_strided_slice %7 {offsets = [0, 12], sizes = [4, 4], strides = [1, 1]} : vector<4x36xf32> to vector<4x4xf32>
    %cst_44 = arith.constant dense<0.000000e+00> : vector<4x256xf32>
    %127 = tpu.matmul %126, %125, %cst_44 {dimension_numbers = #tpu.dot_dimension_numbers<[1], [0], [0], [1], [0, 0, 1, 1], [], []>} : vector<4x4xf32>, vector<4x256xf32>, vector<4x256xf32> -> vector<4x256xf32>
    %128 = arith.addf %119, %127 : vector<4x256xf32>
    %129 = vector.extract_strided_slice %7 {offsets = [0, 16], sizes = [4, 4], strides = [1, 1]} : vector<4x36xf32> to vector<4x4xf32>
    %cst_45 = arith.constant dense<0.000000e+00> : vector<4x256xf32>
    %130 = tpu.matmul %129, %93, %cst_45 {dimension_numbers = #tpu.dot_dimension_numbers<[1], [0], [0], [1], [0, 0, 1, 1], [], []>} : vector<4x4xf32>, vector<4x256xf32>, vector<4x256xf32> -> vector<4x256xf32>
    %131 = arith.addf %128, %130 : vector<4x256xf32>
    %c255_i32 = arith.constant 255 : i32
    %132 = tpu.dynamic_rotate %93 by %c255_i32 dim 1 : vector<4x256xf32>, i32 -> vector<4x256xf32>
    %133 = arith.andi %59, %41 : vector<1x256xi1>
    %cst_46 = arith.constant 0.000000e+00 : f32
    %134 = vector.shape_cast %133 : vector<1x256xi1> to vector<1x256xi1>
    %135 = vector.broadcast %134 : vector<1x256xi1> to vector<4x256xi1>
    %136 = vector.broadcast %cst_46 : f32 to vector<4x256xf32>
    %137 = arith.select %135, %132, %136 : vector<4x256xi1>, vector<4x256xf32>
    %138 = vector.extract_strided_slice %7 {offsets = [0, 20], sizes = [4, 4], strides = [1, 1]} : vector<4x36xf32> to vector<4x4xf32>
    %cst_47 = arith.constant dense<0.000000e+00> : vector<4x256xf32>
    %139 = tpu.matmul %138, %137, %cst_47 {dimension_numbers = #tpu.dot_dimension_numbers<[1], [0], [0], [1], [0, 0, 1, 1], [], []>} : vector<4x4xf32>, vector<4x256xf32>, vector<4x256xf32> -> vector<4x256xf32>
    %140 = arith.addf %131, %139 : vector<4x256xf32>
    %c241_i32 = arith.constant 241 : i32
    %141 = tpu.dynamic_rotate %93 by %c241_i32 dim 1 : vector<4x256xf32>, i32 -> vector<4x256xf32>
    %142 = arith.andi %68, %23 : vector<1x256xi1>
    %cst_48 = arith.constant 0.000000e+00 : f32
    %143 = vector.shape_cast %142 : vector<1x256xi1> to vector<1x256xi1>
    %144 = vector.broadcast %143 : vector<1x256xi1> to vector<4x256xi1>
    %145 = vector.broadcast %cst_48 : f32 to vector<4x256xf32>
    %146 = arith.select %144, %141, %145 : vector<4x256xi1>, vector<4x256xf32>
    %147 = vector.extract_strided_slice %7 {offsets = [0, 24], sizes = [4, 4], strides = [1, 1]} : vector<4x36xf32> to vector<4x4xf32>
    %cst_49 = arith.constant dense<0.000000e+00> : vector<4x256xf32>
    %148 = tpu.matmul %147, %146, %cst_49 {dimension_numbers = #tpu.dot_dimension_numbers<[1], [0], [0], [1], [0, 0, 1, 1], [], []>} : vector<4x4xf32>, vector<4x256xf32>, vector<4x256xf32> -> vector<4x256xf32>
    %149 = arith.addf %140, %148 : vector<4x256xf32>
    %c240_i32 = arith.constant 240 : i32
    %150 = tpu.dynamic_rotate %93 by %c240_i32 dim 1 : vector<4x256xf32>, i32 -> vector<4x256xf32>
    %151 = arith.andi %68, %32 : vector<1x256xi1>
    %cst_50 = arith.constant 0.000000e+00 : f32
    %152 = vector.shape_cast %151 : vector<1x256xi1> to vector<1x256xi1>
    %153 = vector.broadcast %152 : vector<1x256xi1> to vector<4x256xi1>
    %154 = vector.broadcast %cst_50 : f32 to vector<4x256xf32>
    %155 = arith.select %153, %150, %154 : vector<4x256xi1>, vector<4x256xf32>
    %156 = vector.extract_strided_slice %7 {offsets = [0, 28], sizes = [4, 4], strides = [1, 1]} : vector<4x36xf32> to vector<4x4xf32>
    %cst_51 = arith.constant dense<0.000000e+00> : vector<4x256xf32>
    %157 = tpu.matmul %156, %155, %cst_51 {dimension_numbers = #tpu.dot_dimension_numbers<[1], [0], [0], [1], [0, 0, 1, 1], [], []>} : vector<4x4xf32>, vector<4x256xf32>, vector<4x256xf32> -> vector<4x256xf32>
    %158 = arith.addf %149, %157 : vector<4x256xf32>
    %c239_i32 = arith.constant 239 : i32
    %159 = tpu.dynamic_rotate %93 by %c239_i32 dim 1 : vector<4x256xf32>, i32 -> vector<4x256xf32>
    %160 = arith.andi %68, %41 : vector<1x256xi1>
    %cst_52 = arith.constant 0.000000e+00 : f32
    %161 = vector.shape_cast %160 : vector<1x256xi1> to vector<1x256xi1>
    %162 = vector.broadcast %161 : vector<1x256xi1> to vector<4x256xi1>
    %163 = vector.broadcast %cst_52 : f32 to vector<4x256xf32>
    %164 = arith.select %162, %159, %163 : vector<4x256xi1>, vector<4x256xf32>
    %165 = vector.extract_strided_slice %7 {offsets = [0, 32], sizes = [4, 4], strides = [1, 1]} : vector<4x36xf32> to vector<4x4xf32>
    %cst_53 = arith.constant dense<0.000000e+00> : vector<4x256xf32>
    %166 = tpu.matmul %165, %164, %cst_53 {dimension_numbers = #tpu.dot_dimension_numbers<[1], [0], [0], [1], [0, 0, 1, 1], [], []>} : vector<4x4xf32>, vector<4x256xf32>, vector<4x256xf32> -> vector<4x256xf32>
    %167 = arith.addf %158, %166 : vector<4x256xf32>
    %cst_54 = arith.constant dense<0.000000e+00> : vector<4xf32>
    %168 = vector.multi_reduction <add>, %167, %cst_54 [1] : vector<4x256xf32> to vector<4xf32>
    %169 = vector.shape_cast %168 : vector<4xf32> to vector<4x1xf32>
    %cst_55 = arith.constant 3.906250e-03 : f32
    %170 = vector.broadcast %cst_55 : f32 to vector<4x1xf32>
    %171 = arith.mulf %169, %170 : vector<4x1xf32>
    %172 = vector.broadcast %171 : vector<4x1xf32> to vector<4x256xf32>
    %173 = arith.subf %167, %172 : vector<4x256xf32>
    %174 = arith.mulf %173, %173 : vector<4x256xf32>
    %cst_56 = arith.constant dense<0.000000e+00> : vector<4xf32>
    %175 = vector.multi_reduction <add>, %174, %cst_56 [1] : vector<4x256xf32> to vector<4xf32>
    %176 = vector.shape_cast %175 : vector<4xf32> to vector<4x1xf32>
    %cst_57 = arith.constant 3.906250e-03 : f32
    %177 = vector.broadcast %cst_57 : f32 to vector<4x1xf32>
    %178 = arith.mulf %176, %177 : vector<4x1xf32>
    %cst_58 = arith.constant 9.99999974E-6 : f32
    %179 = vector.broadcast %cst_58 : f32 to vector<4x1xf32>
    %180 = arith.addf %178, %179 : vector<4x1xf32>
    %181 = math.rsqrt %180 : vector<4x1xf32>
    %182 = vector.broadcast %181 : vector<4x1xf32> to vector<4x256xf32>
    %183 = arith.mulf %173, %182 : vector<4x256xf32>
    %184 = vector.broadcast %4 : vector<4x1xf32> to vector<4x256xf32>
    %185 = arith.mulf %183, %184 : vector<4x256xf32>
    %186 = vector.broadcast %5 : vector<4x1xf32> to vector<4x256xf32>
    %187 = arith.addf %185, %186 : vector<4x256xf32>
    %cst_59 = arith.constant 0.000000e+00 : f32
    %188 = vector.broadcast %cst_59 : f32 to vector<4x256xf32>
    %189 = arith.cmpf ogt, %187, %188 : vector<4x256xf32>
    %cst_60 = arith.constant 2.000000e-01 : f32
    %190 = vector.broadcast %cst_60 : f32 to vector<4x256xf32>
    %191 = arith.mulf %190, %187 : vector<4x256xf32>
    %192 = arith.select %189, %187, %191 : vector<4x256xi1>, vector<4x256xf32>
    %c17_i32_61 = arith.constant 17 : i32
    %193 = tpu.dynamic_rotate %192 by %c17_i32_61 dim 1 : vector<4x256xf32>, i32 -> vector<4x256xf32>
    %194 = arith.andi %50, %23 : vector<1x256xi1>
    %cst_62 = arith.constant 0.000000e+00 : f32
    %195 = vector.shape_cast %194 : vector<1x256xi1> to vector<1x256xi1>
    %196 = vector.broadcast %195 : vector<1x256xi1> to vector<4x256xi1>
    %197 = vector.broadcast %cst_62 : f32 to vector<4x256xf32>
    %198 = arith.select %196, %193, %197 : vector<4x256xi1>, vector<4x256xf32>
    %199 = vector.extract_strided_slice %9 {offsets = [0, 0], sizes = [4, 4], strides = [1, 1]} : vector<4x36xf32> to vector<4x4xf32>
    %cst_63 = arith.constant dense<0.000000e+00> : vector<4x256xf32>
    %200 = tpu.matmul %199, %198, %cst_63 {dimension_numbers = #tpu.dot_dimension_numbers<[1], [0], [0], [1], [0, 0, 1, 1], [], []>} : vector<4x4xf32>, vector<4x256xf32>, vector<4x256xf32> -> vector<4x256xf32>
    %c16_i32_64 = arith.constant 16 : i32
    %201 = tpu.dynamic_rotate %192 by %c16_i32_64 dim 1 : vector<4x256xf32>, i32 -> vector<4x256xf32>
    %202 = arith.andi %50, %32 : vector<1x256xi1>
    %cst_65 = arith.constant 0.000000e+00 : f32
    %203 = vector.shape_cast %202 : vector<1x256xi1> to vector<1x256xi1>
    %204 = vector.broadcast %203 : vector<1x256xi1> to vector<4x256xi1>
    %205 = vector.broadcast %cst_65 : f32 to vector<4x256xf32>
    %206 = arith.select %204, %201, %205 : vector<4x256xi1>, vector<4x256xf32>
    %207 = vector.extract_strided_slice %9 {offsets = [0, 4], sizes = [4, 4], strides = [1, 1]} : vector<4x36xf32> to vector<4x4xf32>
    %cst_66 = arith.constant dense<0.000000e+00> : vector<4x256xf32>
    %208 = tpu.matmul %207, %206, %cst_66 {dimension_numbers = #tpu.dot_dimension_numbers<[1], [0], [0], [1], [0, 0, 1, 1], [], []>} : vector<4x4xf32>, vector<4x256xf32>, vector<4x256xf32> -> vector<4x256xf32>
    %209 = arith.addf %200, %208 : vector<4x256xf32>
    %c15_i32_67 = arith.constant 15 : i32
    %210 = tpu.dynamic_rotate %192 by %c15_i32_67 dim 1 : vector<4x256xf32>, i32 -> vector<4x256xf32>
    %211 = arith.andi %50, %41 : vector<1x256xi1>
    %cst_68 = arith.constant 0.000000e+00 : f32
    %212 = vector.shape_cast %211 : vector<1x256xi1> to vector<1x256xi1>
    %213 = vector.broadcast %212 : vector<1x256xi1> to vector<4x256xi1>
    %214 = vector.broadcast %cst_68 : f32 to vector<4x256xf32>
    %215 = arith.select %213, %210, %214 : vector<4x256xi1>, vector<4x256xf32>
    %216 = vector.extract_strided_slice %9 {offsets = [0, 8], sizes = [4, 4], strides = [1, 1]} : vector<4x36xf32> to vector<4x4xf32>
    %cst_69 = arith.constant dense<0.000000e+00> : vector<4x256xf32>
    %217 = tpu.matmul %216, %215, %cst_69 {dimension_numbers = #tpu.dot_dimension_numbers<[1], [0], [0], [1], [0, 0, 1, 1], [], []>} : vector<4x4xf32>, vector<4x256xf32>, vector<4x256xf32> -> vector<4x256xf32>
    %218 = arith.addf %209, %217 : vector<4x256xf32>
    %c1_i32_70 = arith.constant 1 : i32
    %219 = tpu.dynamic_rotate %192 by %c1_i32_70 dim 1 : vector<4x256xf32>, i32 -> vector<4x256xf32>
    %220 = arith.andi %59, %23 : vector<1x256xi1>
    %cst_71 = arith.constant 0.000000e+00 : f32
    %221 = vector.shape_cast %220 : vector<1x256xi1> to vector<1x256xi1>
    %222 = vector.broadcast %221 : vector<1x256xi1> to vector<4x256xi1>
    %223 = vector.broadcast %cst_71 : f32 to vector<4x256xf32>
    %224 = arith.select %222, %219, %223 : vector<4x256xi1>, vector<4x256xf32>
    %225 = vector.extract_strided_slice %9 {offsets = [0, 12], sizes = [4, 4], strides = [1, 1]} : vector<4x36xf32> to vector<4x4xf32>
    %cst_72 = arith.constant dense<0.000000e+00> : vector<4x256xf32>
    %226 = tpu.matmul %225, %224, %cst_72 {dimension_numbers = #tpu.dot_dimension_numbers<[1], [0], [0], [1], [0, 0, 1, 1], [], []>} : vector<4x4xf32>, vector<4x256xf32>, vector<4x256xf32> -> vector<4x256xf32>
    %227 = arith.addf %218, %226 : vector<4x256xf32>
    %228 = vector.extract_strided_slice %9 {offsets = [0, 16], sizes = [4, 4], strides = [1, 1]} : vector<4x36xf32> to vector<4x4xf32>
    %cst_73 = arith.constant dense<0.000000e+00> : vector<4x256xf32>
    %229 = tpu.matmul %228, %192, %cst_73 {dimension_numbers = #tpu.dot_dimension_numbers<[1], [0], [0], [1], [0, 0, 1, 1], [], []>} : vector<4x4xf32>, vector<4x256xf32>, vector<4x256xf32> -> vector<4x256xf32>
    %230 = arith.addf %227, %229 : vector<4x256xf32>
    %c255_i32_74 = arith.constant 255 : i32
    %231 = tpu.dynamic_rotate %192 by %c255_i32_74 dim 1 : vector<4x256xf32>, i32 -> vector<4x256xf32>
    %232 = arith.andi %59, %41 : vector<1x256xi1>
    %cst_75 = arith.constant 0.000000e+00 : f32
    %233 = vector.shape_cast %232 : vector<1x256xi1> to vector<1x256xi1>
    %234 = vector.broadcast %233 : vector<1x256xi1> to vector<4x256xi1>
    %235 = vector.broadcast %cst_75 : f32 to vector<4x256xf32>
    %236 = arith.select %234, %231, %235 : vector<4x256xi1>, vector<4x256xf32>
    %237 = vector.extract_strided_slice %9 {offsets = [0, 20], sizes = [4, 4], strides = [1, 1]} : vector<4x36xf32> to vector<4x4xf32>
    %cst_76 = arith.constant dense<0.000000e+00> : vector<4x256xf32>
    %238 = tpu.matmul %237, %236, %cst_76 {dimension_numbers = #tpu.dot_dimension_numbers<[1], [0], [0], [1], [0, 0, 1, 1], [], []>} : vector<4x4xf32>, vector<4x256xf32>, vector<4x256xf32> -> vector<4x256xf32>
    %239 = arith.addf %230, %238 : vector<4x256xf32>
    %c241_i32_77 = arith.constant 241 : i32
    %240 = tpu.dynamic_rotate %192 by %c241_i32_77 dim 1 : vector<4x256xf32>, i32 -> vector<4x256xf32>
    %241 = arith.andi %68, %23 : vector<1x256xi1>
    %cst_78 = arith.constant 0.000000e+00 : f32
    %242 = vector.shape_cast %241 : vector<1x256xi1> to vector<1x256xi1>
    %243 = vector.broadcast %242 : vector<1x256xi1> to vector<4x256xi1>
    %244 = vector.broadcast %cst_78 : f32 to vector<4x256xf32>
    %245 = arith.select %243, %240, %244 : vector<4x256xi1>, vector<4x256xf32>
    %246 = vector.extract_strided_slice %9 {offsets = [0, 24], sizes = [4, 4], strides = [1, 1]} : vector<4x36xf32> to vector<4x4xf32>
    %cst_79 = arith.constant dense<0.000000e+00> : vector<4x256xf32>
    %247 = tpu.matmul %246, %245, %cst_79 {dimension_numbers = #tpu.dot_dimension_numbers<[1], [0], [0], [1], [0, 0, 1, 1], [], []>} : vector<4x4xf32>, vector<4x256xf32>, vector<4x256xf32> -> vector<4x256xf32>
    %248 = arith.addf %239, %247 : vector<4x256xf32>
    %c240_i32_80 = arith.constant 240 : i32
    %249 = tpu.dynamic_rotate %192 by %c240_i32_80 dim 1 : vector<4x256xf32>, i32 -> vector<4x256xf32>
    %250 = arith.andi %68, %32 : vector<1x256xi1>
    %cst_81 = arith.constant 0.000000e+00 : f32
    %251 = vector.shape_cast %250 : vector<1x256xi1> to vector<1x256xi1>
    %252 = vector.broadcast %251 : vector<1x256xi1> to vector<4x256xi1>
    %253 = vector.broadcast %cst_81 : f32 to vector<4x256xf32>
    %254 = arith.select %252, %249, %253 : vector<4x256xi1>, vector<4x256xf32>
    %255 = vector.extract_strided_slice %9 {offsets = [0, 28], sizes = [4, 4], strides = [1, 1]} : vector<4x36xf32> to vector<4x4xf32>
    %cst_82 = arith.constant dense<0.000000e+00> : vector<4x256xf32>
    %256 = tpu.matmul %255, %254, %cst_82 {dimension_numbers = #tpu.dot_dimension_numbers<[1], [0], [0], [1], [0, 0, 1, 1], [], []>} : vector<4x4xf32>, vector<4x256xf32>, vector<4x256xf32> -> vector<4x256xf32>
    %257 = arith.addf %248, %256 : vector<4x256xf32>
    %c239_i32_83 = arith.constant 239 : i32
    %258 = tpu.dynamic_rotate %192 by %c239_i32_83 dim 1 : vector<4x256xf32>, i32 -> vector<4x256xf32>
    %259 = arith.andi %68, %41 : vector<1x256xi1>
    %cst_84 = arith.constant 0.000000e+00 : f32
    %260 = vector.shape_cast %259 : vector<1x256xi1> to vector<1x256xi1>
    %261 = vector.broadcast %260 : vector<1x256xi1> to vector<4x256xi1>
    %262 = vector.broadcast %cst_84 : f32 to vector<4x256xf32>
    %263 = arith.select %261, %258, %262 : vector<4x256xi1>, vector<4x256xf32>
    %264 = vector.extract_strided_slice %9 {offsets = [0, 32], sizes = [4, 4], strides = [1, 1]} : vector<4x36xf32> to vector<4x4xf32>
    %cst_85 = arith.constant dense<0.000000e+00> : vector<4x256xf32>
    %265 = tpu.matmul %264, %263, %cst_85 {dimension_numbers = #tpu.dot_dimension_numbers<[1], [0], [0], [1], [0, 0, 1, 1], [], []>} : vector<4x4xf32>, vector<4x256xf32>, vector<4x256xf32> -> vector<4x256xf32>
    %266 = arith.addf %257, %265 : vector<4x256xf32>
    %267 = arith.addf %93, %266 : vector<4x256xf32>
    %c0_86 = arith.constant 0 : index
    %c0_87 = arith.constant 0 : index
    %268 = vector.load %arg4[%c0_86, %c0_87] : memref<4x256xf32, #tpu.memory_space<vmem>>, vector<4x256xf32>
    tpu.vector_store %arg4[%c0_86, %c0_87], %267 {strides = array<i32>} : memref<4x256xf32, #tpu.memory_space<vmem>>, vector<4x256xf32>,
    return
  }
  func.func @transform_0(%arg0: i32) -> (i32, i32) {
    %c0_i32 = arith.constant 0 : i32
    %c0_i32_0 = arith.constant 0 : i32
    return %c0_i32, %arg0 : i32, i32
  }
  func.func @transform_1(%arg0: i32) -> (i32, i32) {
    %c0_i32 = arith.constant 0 : i32
    %c0_i32_0 = arith.constant 0 : i32
    %c0_i32_1 = arith.constant 0 : i32
    return %c0_i32, %c0_i32_0 : i32, i32
  }
  func.func @transform_2(%arg0: i32) -> (i32, i32, i32) {
    %c0_i32 = arith.constant 0 : i32
    %c0_i32_0 = arith.constant 0 : i32
    %c0_i32_1 = arith.constant 0 : i32
    %c0_i32_2 = arith.constant 0 : i32
    return %c0_i32, %c0_i32_0, %c0_i32_1 : i32, i32, i32
  }
  func.func @transform_3(%arg0: i32) -> (i32, i32) {
    %c0_i32 = arith.constant 0 : i32
    %c0_i32_0 = arith.constant 0 : i32
    return %c0_i32, %arg0 : i32, i32
  }
}

</mosaic_0001>

<llo_original>
// kernel: tpu_custom_call.1
$region0: #{tpu_custom_call.1}
  #allocation0 [shape = 'u32[]', space=smem, size = 0x4, offset = 0x4, fixed_abs, tag = 'smem constant byte address 0x4 - core index']
  #allocation1 [shape = 'u32[144,128]{1,0:T(1,128)}', space=vmem, size = 0x12000, scoped, tag = 'internal scratch']
  %s0 = inlined_call_operand.hbm [shape: f32[4,512], index: 0, kind: input, shape index: {}]
  %s1 = inlined_call_operand.hbm [shape: f32[4,4], index: 1, kind: input, shape index: {}]
  %s2 = inlined_call_operand.hbm [shape: f32[2,4,36], index: 2, kind: input, shape index: {}]
  %s3 = inlined_call_operand.hbm [shape: f32[4,512], index: 3, kind: output, shape index: {}]
  %s4 = sld [smem:[#allocation0]]
  $region57: #{tpu_custom_call.1} parent=0
    _
  %s6 = ssub.s32 1, %s4
  %s7 = scalar_select 0, %s6, %s4
  $region1: #{tpu_custom_call.1} parent=0
    #allocation2 [shape = 'u8[8192]{0}', space=vmem, size = 0x2000, scoped, tag = 'input window, operand 0']
    #allocation3 [shape = 's32[2]{0}', space=sflag, size = 0x8, scoped, tag = 'scoped memory for tpu_custom_call.1']
    #allocation4 [shape = 's32[2]{0}', space=sflag, size = 0x8, scoped, tag = 'scoped memory for tpu_custom_call.1']
    #allocation5 [shape = 'u8[2048]{0}', space=vmem, size = 0x800, scoped, tag = 'input window, operand 1, single buffered']
    #allocation6 [shape = 's32[1]{0}', space=sflag, size = 0x4, scoped, tag = 'scoped memory for tpu_custom_call.1']
    #allocation7 [shape = 'u8[4096]{0}', space=vmem, size = 0x1000, scoped, tag = 'input window, operand 2, single buffered']
    #allocation8 [shape = 'u8[8192]{0}', space=vmem, size = 0x2000, scoped, tag = 'output window, operand 0']
    %8 = vsyncpa [#allocation3], 0
    %s9 = scalar_lea.sflag [#allocation3], 1
    %10 = vsyncpa %s9, 0
    %11 = vsyncpa [#allocation6], 0
    %12 = vsyncpa [#allocation4], 0
    %s13 = scalar_lea.sflag [#allocation4], 1
    %14 = vsyncpa %s13, 0
    loop: start=0, step=1, limit=4
    $region2: #{tpu_custom_call.1} parent=1 // loop_pre_header
      _
    $region3: #{tpu_custom_call.1} parent=1 // loop_header
      %s16 = sphi 0, %s20
      %p17 = scmp.ge.s32.totalorder %s16, 4
      %s26 = sphi 0, %s28
      %s29 = sphi 0, %s26
      %s30 = sphi 0, %s29
      %s46 = sphi 0, %s30
      %s50 = sphi 0, %s50
      %s52 = sphi 0, %s50
      %s53 = sphi 0, %s52
      %s67 = sphi 0, %s53
      %s71 = sphi 0, %s71
      %s73 = sphi 0, %s71
      %s74 = sphi 0, %s73
      %s88 = sphi 0, %s74
      %s94 = sphi 0, %s96
      %s97 = sphi 0, %s94
      %s98 = sphi 0, %s97
      %s114 = sphi 0, %s98
    $region4: #{tpu_custom_call.1} parent=1 // loop_header_branch
      %19 = sbr.rel (%p17) target = $region8
    $region5: #{tpu_custom_call.1} parent=1 // loop_body
      %s21 = ssub.s32 %s16, 1
      %s22 = ssub.s32 %s16, 2
      %s23 = sadd.s32 %s16, 1
      %s24 = ssub.s32 %s16, %s23
      %p25 = scmp.eq.s32.totalorder %s24, 0
      %s27 = sadd.s32 %s26, 1
      %s28 = scalar_select %p25, %s26, %s27
      %p31 = pneg %p25
      %p32 = scmp.eq.s32.totalorder %s16, 1
      %p33 = por %p31, %p32
      %p34 = scmp.ne.s32.totalorder %s26, %s29
      %p35 = scmp.eq.s32.totalorder %s16, 0
      %p36 = por %p34, %p35
      %p37 = scmp.ne.s32.totalorder %s26, %s29
      %p38 = scmp.eq.s32.totalorder %s21, 1
      %p39 = por %p37, %p38
      %p40 = scmp.ne.s32.totalorder %s29, %s30
      %p41 = scmp.eq.s32.totalorder %s21, 0
      %p42 = por %p40, %p41
      %p43 = scmp.ne.s32.totalorder %s29, %s30
      %p44 = scmp.eq.s32.totalorder %s22, 1
      %p45 = por %p43, %p44
      %p47 = scmp.ne.s32.totalorder %s30, %s46
      %p48 = scmp.eq.s32.totalorder %s22, 0
      %p49 = por %p47, %p48
      %s51 = sadd.s32 %s50, 1
      %p54 = scmp.eq.s32.totalorder %s16, 1
      %p55 = scmp.ne.s32.totalorder %s50, %s52
      %p56 = scmp.eq.s32.totalorder %s16, 0
      %p57 = por %p55, %p56
      %p58 = scmp.ne.s32.totalorder %s50, %s52
      %p59 = scmp.eq.s32.totalorder %s21, 1
      %p60 = por %p58, %p59
      %p61 = scmp.ne.s32.totalorder %s52, %s53
      %p62 = scmp.eq.s32.totalorder %s21, 0
      %p63 = por %p61, %p62
      %p64 = scmp.ne.s32.totalorder %s52, %s53
      %p65 = scmp.eq.s32.totalorder %s22, 1
      %p66 = por %p64, %p65
      %p68 = scmp.ne.s32.totalorder %s53, %s67
      %p69 = scmp.eq.s32.totalorder %s22, 0
      %p70 = por %p68, %p69
      %s72 = sadd.s32 %s71, 1
      %p75 = scmp.eq.s32.totalorder %s16, 1
      %p76 = scmp.ne.s32.totalorder %s71, %s73
      %p77 = scmp.eq.s32.totalorder %s16, 0
      %p78 = por %p76, %p77
      %p79 = scmp.ne.s32.totalorder %s71, %s73
      %p80 = scmp.eq.s32.totalorder %s21, 1
      %p81 = por %p79, %p80
      %p82 = scmp.ne.s32.totalorder %s73, %s74
      %p83 = scmp.eq.s32.totalorder %s21, 0
      %p84 = por %p82, %p83
      %p85 = scmp.ne.s32.totalorder %s73, %s74
      %p86 = scmp.eq.s32.totalorder %s22, 1
      %p87 = por %p85, %p86
      %p89 = scmp.ne.s32.totalorder %s74, %s88
      %p90 = scmp.eq.s32.totalorder %s22, 0
      %p91 = por %p89, %p90
      %s92 = ssub.s32 %s16, %s23
      %p93 = scmp.eq.s32.totalorder %s92, 0
      %s95 = sadd.s32 %s94, 1
      %s96 = scalar_select %p93, %s94, %s95
      %p99 = pneg %p93
      %p100 = scmp.eq.s32.totalorder %s16, 1
      %p101 = por %p99, %p100
      %p102 = scmp.ne.s32.totalorder %s94, %s97
      %p103 = scmp.eq.s32.totalorder %s16, 0
      %p104 = por %p102, %p103
      %p105 = scmp.ne.s32.totalorder %s94, %s97
      %p106 = scmp.eq.s32.totalorder %s21, 1
      %p107 = por %p105, %p106
      %p108 = scmp.ne.s32.totalorder %s97, %s98
      %p109 = scmp.eq.s32.totalorder %s21, 0
      %p110 = por %p108, %p109
      %p111 = scmp.ne.s32.totalorder %s97, %s98
      %p112 = scmp.eq.s32.totalorder %s22, 1
      %p113 = por %p111, %p112
      %p115 = scmp.ne.s32.totalorder %s98, %s114
      %p116 = scmp.eq.s32.totalorder %s22, 0
      %p117 = por %p115, %p116
      %p118 = scmp.le.s32.totalorder 1, %s16
      %p119 = scmp.lt.s32.totalorder %s16, 3
      %p120 = pnand %p118, %p119
      %p121 = pneg %p120
      // Predicated region
      $region9: #{tpu_custom_call.1} parent=5 // pred_check
        _
      $region10: #{tpu_custom_call.1} parent=5 // pred_check_branch
        %123 = sbr.rel (%p120) target = $region12
      $region11: #{tpu_custom_call.1} parent=5 // pred_region
        %s124 = ssub.s32 %s16, 1
        // Predicated region
        $region13: #{tpu_custom_call.1} parent=11 // pred_check
          %p125 = pneg %p63
        $region14: #{tpu_custom_call.1} parent=11 // pred_check_branch
          %127 = sbr.rel (%p125) target = $region16
        $region15: #{tpu_custom_call.1} parent=11 // pred_region
          %s129 = ssub.s32 64, 64
          %130 = vsyncadd [#allocation6], %s129
          %s132 = sshll.u32 [#allocation5], 4
          %s133 = int_to_ptr.vmem [resolvable:$true] %s132
          %135 = dma.hbm_to_vmem [thread:$0]  %s1, 64, %s133, [#allocation6]
        $region16: #{tpu_custom_call.1} parent=11 // pred_fallthru
          _
        // Predicated region
        $region17: #{tpu_custom_call.1} parent=11 // pred_check
          %p136 = pneg %p84
        $region18: #{tpu_custom_call.1} parent=11 // pred_check_branch
          %138 = sbr.rel (%p136) target = $region20
        $region19: #{tpu_custom_call.1} parent=11 // pred_region
          %s140 = ssub.s32 128, 128
          %141 = vsyncadd [#allocation6], %s140
          %s142 = sshll.u32 [#allocation7], 4
          %s143 = int_to_ptr.vmem [resolvable:$true] %s142
          %148 = dma.hbm_to_vmem [thread:$0]  %s2, 128, %s143, [#allocation6], 64, 64, 4
        $region20: #{tpu_custom_call.1} parent=11 // pred_fallthru
          _
      $region12: #{tpu_custom_call.1} parent=5 // pred_fallthru
        _
      %p149 = scmp.lt.s32.totalorder %s16, 2
      // Predicated region
      $region21: #{tpu_custom_call.1} parent=5 // pred_check
        %p150 = pneg %p149
      $region22: #{tpu_custom_call.1} parent=5 // pred_check_branch
        %152 = sbr.rel (%p150) target = $region24
      $region23: #{tpu_custom_call.1} parent=5 // pred_region
        // Predicated region
        $region25: #{tpu_custom_call.1} parent=23 // pred_check
          %p153 = pneg %p36
        $region26: #{tpu_custom_call.1} parent=23 // pred_check_branch
          %155 = sbr.rel (%p153) target = $region28
        $region27: #{tpu_custom_call.1} parent=23 // pred_region
          %s156 = sand.u32 %s26, 1
          %s157 = scalar_lea.sflag [#allocation3], %s156
          %s158 = sand.u32 %s26, 1
          %s159 = smul.addr %s158, 8
          %s160 = scalar_lea.vmem [#allocation2], %s159
          %s161 = smul.u32 2, %s16
          %s163 = ssub.s32 128, 128
          %164 = vsyncadd %s157, %s163
          %s165 = smul.addr %s161, 64
          %s166 = scalar_lea.hbm %s0, %s165
          %s168 = sshll.u32 %s160, 4
          %s169 = int_to_ptr.vmem [resolvable:$true] %s168
          %171 = dma.hbm_to_vmem [thread:$0]  %s166, 128, %s169, %s157
        $region28: #{tpu_custom_call.1} parent=23 // pred_fallthru
          _
      $region24: #{tpu_custom_call.1} parent=5 // pred_fallthru
        _
      %p172 = scmp.le.s32.totalorder 1, %s16
      %p173 = scmp.lt.s32.totalorder %s16, 3
      %p174 = pnand %p172, %p173
      %p175 = pneg %p174
      // Predicated region
      $region29: #{tpu_custom_call.1} parent=5 // pred_check
        _
      $region30: #{tpu_custom_call.1} parent=5 // pred_check_branch
        %177 = sbr.rel (%p174) target = $region32
      $region31: #{tpu_custom_call.1} parent=5 // pred_region
        %s178 = ssub.s32 %s16, 1
        %s179 = sand.u32 %s29, 1
        %s180 = scalar_lea.sflag [#allocation3], %s179
        %s181 = sand.u32 %s29, 1
        %s182 = smul.addr %s181, 8
        %s183 = scalar_lea.vmem [#allocation2], %s182
        // Predicated region
        $region33: #{tpu_custom_call.1} parent=31 // pred_check
          %p184 = pneg %p42
        $region34: #{tpu_custom_call.1} parent=31 // pred_check_branch
          %186 = sbr.rel (%p184) target = $region36
        $region35: #{tpu_custom_call.1} parent=31 // pred_region
          %187 = dma.done %s180, 128
        $region36: #{tpu_custom_call.1} parent=31 // pred_fallthru
          _
        // Predicated region
        $region37: #{tpu_custom_call.1} parent=31 // pred_check
          %p188 = pneg %p63
        $region38: #{tpu_custom_call.1} parent=31 // pred_check_branch
          %190 = sbr.rel (%p188) target = $region40
        $region39: #{tpu_custom_call.1} parent=31 // pred_region
          %191 = dma.done [#allocation6], 64
        $region40: #{tpu_custom_call.1} parent=31 // pred_fallthru
          _
        // Predicated region
        $region41: #{tpu_custom_call.1} parent=31 // pred_check
          %p192 = pneg %p84
        $region42: #{tpu_custom_call.1} parent=31 // pred_check_branch
          %194 = sbr.rel (%p192) target = $region44
        $region43: #{tpu_custom_call.1} parent=31 // pred_region
          %195 = dma.done [#allocation6], 128
        $region44: #{tpu_custom_call.1} parent=31 // pred_fallthru
          _
        %s196 = sand.u32 %s29, 1
        %s197 = scalar_lea.sflag [#allocation3], %s196
        %s198 = sand.u32 %s29, 1
        %s199 = smul.addr %s198, 8
        %s200 = scalar_lea.vmem [#allocation2], %s199
        %p201 = pneg %p42
        %p202 = pneg %p39
        %p203 = pneg %p63
        %p204 = pneg %p60
        %p205 = pneg %p84
        %p206 = pneg %p81
        %p207 = pneg %p110
        %p208 = pneg %p107
        %s209 = sand.u32 %s97, 1
        %s210 = scalar_lea.sflag [#allocation4], %s209
        %s211 = sand.u32 %s97, 1
        %s212 = smul.addr %s211, 8
        %s213 = scalar_lea.vmem [#allocation8], %s212
        %s214 = smul.u32 2, %s21
        %s215 = smul.u32 2, %s21
        %v216 = vld [vmem:[%s183] sm:$0xff]
        %v217 = vld [vmem:[#allocation5] sm:$0xf]
        %v218 = vld [vmem:[#allocation7] sm:$0xf]
        %s219 = scalar_lea.vmem [#allocation7], 4
        %v220 = vld [vmem:[%s219] sm:$0xf]
        %v221 = vlaneseq
        %v222 = vand.u32 %v221, 127
        %v223 = vadd.s32 %v222, 128
        %v224 = vand.u32 %v222, 15
        %v225 = vand.u32 %v223, 15
        %v226 = vshra.s32 %v222, 4
        %v227 = vshra.s32 %v223, 4
        %v228 = vadd.s32 %v224, 4294967295
        %v229 = vadd.s32 %v225, 4294967295
        %vm230 = vcmp.ge.s32.totalorder %v228, 0
        %vm231 = vcmp.ge.s32.totalorder %v229, 0
        %vm232 = vcmp.lt.s32.totalorder %v228, 16
        %vm233 = vcmp.lt.s32.totalorder %v229, 16
        %vm234 = vmand %vm230, %vm232
        %vm235 = vmand %vm231, %vm233
        %vm236 = vcmp.ge.s32.totalorder %v224, 0
        %vm237 = vcmp.ge.s32.totalorder %v225, 0
        %vm238 = vcmp.lt.s32.totalorder %v224, 16
        %vm239 = vcmp.lt.s32.totalorder %v225, 16
        %vm240 = vmand %vm236, %vm238
        %vm241 = vmand %vm237, %vm239
        %v242 = vadd.s32 %v224, 1
        %v243 = vadd.s32 %v225, 1
        %vm244 = vcmp.ge.s32.totalorder %v242, 0
        %vm245 = vcmp.ge.s32.totalorder %v243, 0
        %vm246 = vcmp.lt.s32.totalorder %v242, 16
        %vm247 = vcmp.lt.s32.totalorder %v243, 16
        %vm248 = vmand %vm244, %vm246
        %vm249 = vmand %vm245, %vm247
        %v250 = vadd.s32 %v226, 4294967295
        %v251 = vadd.s32 %v227, 4294967295
        %vm252 = vcmp.ge.s32.totalorder %v250, 0
        %vm253 = vcmp.ge.s32.totalorder %v251, 0
        %vm254 = vcmp.lt.s32.totalorder %v250, 16
        %vm255 = vcmp.lt.s32.totalorder %v251, 16
        %vm256 = vmand %vm252, %vm254
        %vm257 = vmand %vm253, %vm255
        %vm258 = vcmp.ge.s32.totalorder %v226, 0
        %vm259 = vcmp.ge.s32.totalorder %v227, 0
        %vm260 = vcmp.lt.s32.totalorder %v226, 16
        %vm261 = vcmp.lt.s32.totalorder %v227, 16
        %vm262 = vmand %vm258, %vm260
        %vm263 = vmand %vm259, %vm261
        %v264 = vadd.s32 %v226, 1
        %v265 = vadd.s32 %v227, 1
        %vm266 = vcmp.ge.s32.totalorder %v264, 0
        %vm267 = vcmp.ge.s32.totalorder %v265, 0
        %vm268 = vcmp.lt.s32.totalorder %v264, 16
        %vm269 = vcmp.lt.s32.totalorder %v265, 16
        %vm270 = vmand %vm266, %vm268
        %vm271 = vmand %vm267, %vm269
        %v273 = vcombine.high %v216, %v216
        %vm275 = vcmask 1043456
        %v276 = vsel %vm275, %v216, 0.0
        %v277 = vsel %vm275, %v273, 0.0
        %v278 = vadd.f32 %v276, %v277
        %279 = vadd.xlane.f32.xlu0 %v278
        %v280 = vpop.xlane.xlu0 %279
        %v281 = vmul.f32 %v280, 0.00390625
        %v284 = vunpack.c.l.s4 839922192
        %v285 = vunpack.c.0.s8 %v284
        %v286 = vlaneseq
        %v287 = vshrl.u32 %v286, 7
        %v288 = vsub.s32 %v285, %v287
        %v289 = vrot.slane %v281, %v288
        %v291 = vsub.f32 %v216, %v289
        %v292 = vmul.f32 %v291, %v291
        %v294 = vcombine.high %v292, %v292
        %v296 = vsel %vm275, %v292, 0.0
        %v297 = vsel %vm275, %v294, 0.0
        %v298 = vadd.f32 %v296, %v297
        %299 = vadd.xlane.f32.xlu0 %v298
        %v300 = vpop.xlane.xlu0 %299
        %v301 = vmul.f32 %v300, 0.00390625
        %v302 = vadd.f32 %v301, 1e-05
        %v303 = vrsqrt.pop %v302
        %v306 = vunpack.c.l.s4 839922192
        %v307 = vunpack.c.0.s8 %v306
        %v308 = vlaneseq
        %v309 = vshrl.u32 %v308, 7
        %v310 = vsub.s32 %v307, %v309
        %v311 = vrot.slane %v303, %v310
        %v313 = vmul.f32 %v291, %v311
        %315 = vset.pattern.permute.xlu0 0
        %316 = vperm.xlu0 %315, %v217
        %v317 = vpop.permute.xlu0 %316
        %v319 = vunpack.c.l.s4 839922192
        %v320 = vunpack.c.0.s8 %v319
        %v321 = vlaneseq
        %v322 = vshrl.u32 %v321, 7
        %v323 = vsub.s32 %v320, %v322
        %v324 = vrot.slane %v317, %v323
        %v326 = vmul.f32 %v313, %v324
        %327 = vset.pattern.permute.xlu0 1
        %328 = vperm.xlu0 %327, %v217
        %v329 = vpop.permute.xlu0 %328
        %v331 = vunpack.c.l.s4 839922192
        %v332 = vunpack.c.0.s8 %v331
        %v333 = vlaneseq
        %v334 = vshrl.u32 %v333, 7
        %v335 = vsub.s32 %v332, %v334
        %v336 = vrot.slane %v329, %v335
        %v338 = vadd.f32 %v326, %v336
        %vm339 = vcmp.gt.f32.partialorder %v338, 0.0
        %v340 = vmul.f32 %v338, 0.2
        %v341 = vsel %vm339, %v338, %v340
        %v343 = vcombine.high %v341, %v341
        %345 = vrot.lane.b32.xlu0 %v341, 17
        %v346 = vpop.permute.xlu0 %345
        %347 = vrot.lane.b32.xlu0 %v343, 17
        %v348 = vpop.permute.xlu0 %347
        %vm349 = vcmp.lt.s32.totalorder %v222, 17
        %v350 = vsel %vm349, %v346, %v348
        %v351 = vsel %vm349, %v348, %v346
        %vm352 = vmand %vm256, %vm234
        %vm353 = vmand %vm257, %vm235
        %v354 = vsel %vm352, 1, 0
        %v355 = vsel %vm353, 1, 0
        %vm356 = vcmp.eq.s32.totalorder %v354, 1
        %vm357 = vcmp.eq.s32.totalorder %v355, 1
        %v358 = vsel %vm356, %v351, 0.0
        %v359 = vsel %vm357, %v350, 0.0
        %360 = vrot.lane.b32.xlu0 %v341, 16
        %v361 = vpop.permute.xlu0 %360
        %362 = vrot.lane.b32.xlu0 %v343, 16
        %v363 = vpop.permute.xlu0 %362
        %vm364 = vcmp.lt.s32.totalorder %v222, 16
        %v365 = vsel %vm364, %v361, %v363
        %v366 = vsel %vm364, %v363, %v361
        %vm367 = vmand %vm256, %vm240
        %vm368 = vmand %vm257, %vm241
        %v369 = vsel %vm367, 1, 0
        %v370 = vsel %vm368, 1, 0
        %vm371 = vcmp.eq.s32.totalorder %v369, 1
        %vm372 = vcmp.eq.s32.totalorder %v370, 1
        %v373 = vsel %vm371, %v366, 0.0
        %v374 = vsel %vm372, %v365, 0.0
        %376 = vrot.lane.b32.xlu0 %v218, 124
        %v377 = vpop.permute.xlu0 %376
        %vm378 = vcmask 31744
        %v379 = vsel %vm378, %v377, 0
        %v382 = vsel %vm275, %v373, 0
        %v385 = vsel %vm275, %v374, 0
        %387 = vmatprep.subr.mxu0 0.0
        %388 = vmatpush1.msra.mxu0 0.0
        %389 = vmatprep.subr.mxu0 0.0
        %390 = vmatpush1.msra.mxu0 0.0
        %391 = vmatprep.subr.mxu0 0.0
        %392 = vmatpush1.msra.mxu0 0.0
        %393 = vmatprep.subr.mxu0 0.0
        %394 = vmatpush1.msra.mxu0 0.0
        %395 = vmatprep.subr.mxu0 0.0
        %396 = vmatpush1.msra.mxu0 0.0
        %397 = vmatprep.subr.mxu0 0.0
        %398 = vmatpush1.msra.mxu0 0.0
        %399 = vmatprep.subr.mxu0 0.0
        %400 = vmatpush1.msra.mxu0 0.0
        %401 = vmatprep.subr.mxu0 0.0
        %402 = vmatpush1.msra.mxu0 0.0
        %403 = vmatprep.subr.mxu0 0.0
        %404 = vmatpush1.msra.mxu0 0.0
        %405 = vmatprep.subr.mxu0 0.0
        %406 = vmatpush1.msra.mxu0 0.0
        %407 = vmatprep.subr.mxu0 0.0
        %408 = vmatpush1.msra.mxu0 0.0
        %409 = vmatprep.subr.mxu0 0.0
        %410 = vmatpush1.msra.mxu0 0.0
        %411 = vmatprep.subr.mxu0 0.0
        %412 = vmatpush1.msra.mxu0 0.0
        %413 = vmatprep.subr.mxu0 0.0
        %414 = vmatpush1.msra.mxu0 0.0
        %415 = vmatprep.subr.mxu0 0.0
        %416 = vmatpush1.msra.mxu0 0.0
        %417 = vmatprep.subr.mxu0 %v385
        %418 = vmatpush1.msra.mxu0 %v382
        %419 = vmatprep.subr.mxu0 0.0
        %420 = vmatpush2.msra.mxu0 0.0
        %421 = vmatprep.subr.mxu0 0.0
        %422 = vmatpush2.msra.mxu0 0.0
        %423 = vmatprep.subr.mxu0 0.0
        %424 = vmatpush2.msra.mxu0 0.0
        %425 = vmatprep.subr.mxu0 0.0
        %426 = vmatpush2.msra.mxu0 0.0
        %427 = vmatprep.subr.mxu0 0.0
        %428 = vmatpush2.msra.mxu0 0.0
        %429 = vmatprep.subr.mxu0 0.0
        %430 = vmatpush2.msra.mxu0 0.0
        %431 = vmatprep.subr.mxu0 0.0
        %432 = vmatpush2.msra.mxu0 0.0
        %433 = vmatprep.subr.mxu0 0.0
        %434 = vmatpush2.msra.mxu0 0.0
        %435 = vmatprep.subr.mxu0 0.0
        %436 = vmatpush2.msra.mxu0 0.0
        %437 = vmatprep.subr.mxu0 0.0
        %438 = vmatpush2.msra.mxu0 0.0
        %439 = vmatprep.subr.mxu0 0.0
        %440 = vmatpush2.msra.mxu0 0.0
        %441 = vmatprep.subr.mxu0 0.0
        %442 = vmatpush2.msra.mxu0 0.0
        %443 = vmatprep.subr.mxu0 0.0
        %444 = vmatpush2.msra.mxu0 0.0
        %445 = vmatprep.subr.mxu0 0.0
        %446 = vmatpush2.msra.mxu0 0.0
        %447 = vmatprep.subr.mxu0 0.0
        %448 = vmatpush2.msra.mxu0 0.0
        %449 = vmatprep.subr.mxu0 0.0
        %450 = vmatpush2.msra.mxu0 0.0
        %451 = vmatprep.mubr.f32.mxu0 0.0
        %452 = vmatmul.mubr.f32.gmra.mxu0 %v379
        %v453 = vpop.f32.mrf.mxu0
        %v454 = vadd.f32 0.0, %v453
        %v455 = vpop.f32.mrf.mxu0
        %v456 = vadd.f32 0.0, %v455
        %457 = vdwg.mxu0
        %v458 = vsel %vm378, %v218, 0
        %v461 = vsel %vm275, %v358, 0
        %v464 = vsel %vm275, %v359, 0
        %466 = vmatprep.subr.mxu0 0.0
        %467 = vmatpush1.msra.mxu0 0.0
        %468 = vmatprep.subr.mxu0 0.0
        %469 = vmatpush1.msra.mxu0 0.0
        %470 = vmatprep.subr.mxu0 0.0
        %471 = vmatpush1.msra.mxu0 0.0
        %472 = vmatprep.subr.mxu0 0.0
        %473 = vmatpush1.msra.mxu0 0.0
        %474 = vmatprep.subr.mxu0 0.0
        %475 = vmatpush1.msra.mxu0 0.0
        %476 = vmatprep.subr.mxu0 0.0
        %477 = vmatpush1.msra.mxu0 0.0
        %478 = vmatprep.subr.mxu0 0.0
        %479 = vmatpush1.msra.mxu0 0.0
        %480 = vmatprep.subr.mxu0 0.0
        %481 = vmatpush1.msra.mxu0 0.0
        %482 = vmatprep.subr.mxu0 0.0
        %483 = vmatpush1.msra.mxu0 0.0
        %484 = vmatprep.subr.mxu0 0.0
        %485 = vmatpush1.msra.mxu0 0.0
        %486 = vmatprep.subr.mxu0 0.0
        %487 = vmatpush1.msra.mxu0 0.0
        %488 = vmatprep.subr.mxu0 0.0
        %489 = vmatpush1.msra.mxu0 0.0
        %490 = vmatprep.subr.mxu0 0.0
        %491 = vmatpush1.msra.mxu0 0.0
        %492 = vmatprep.subr.mxu0 0.0
        %493 = vmatpush1.msra.mxu0 0.0
        %494 = vmatprep.subr.mxu0 0.0
        %495 = vmatpush1.msra.mxu0 0.0
        %496 = vmatprep.subr.mxu0 %v464
        %497 = vmatpush1.msra.mxu0 %v461
        %498 = vmatprep.subr.mxu0 0.0
        %499 = vmatpush2.msra.mxu0 0.0
        %500 = vmatprep.subr.mxu0 0.0
        %501 = vmatpush2.msra.mxu0 0.0
        %502 = vmatprep.subr.mxu0 0.0
        %503 = vmatpush2.msra.mxu0 0.0
        %504 = vmatprep.subr.mxu0 0.0
        %505 = vmatpush2.msra.mxu0 0.0
        %506 = vmatprep.subr.mxu0 0.0
        %507 = vmatpush2.msra.mxu0 0.0
        %508 = vmatprep.subr.mxu0 0.0
        %509 = vmatpush2.msra.mxu0 0.0
        %510 = vmatprep.subr.mxu0 0.0
        %511 = vmatpush2.msra.mxu0 0.0
        %512 = vmatprep.subr.mxu0 0.0
        %513 = vmatpush2.msra.mxu0 0.0
        %514 = vmatprep.subr.mxu0 0.0
        %515 = vmatpush2.msra.mxu0 0.0
        %516 = vmatprep.subr.mxu0 0.0
        %517 = vmatpush2.msra.mxu0 0.0
        %518 = vmatprep.subr.mxu0 0.0
        %519 = vmatpush2.msra.mxu0 0.0
        %520 = vmatprep.subr.mxu0 0.0
        %521 = vmatpush2.msra.mxu0 0.0
        %522 = vmatprep.subr.mxu0 0.0
        %523 = vmatpush2.msra.mxu0 0.0
        %524 = vmatprep.subr.mxu0 0.0
        %525 = vmatpush2.msra.mxu0 0.0
        %526 = vmatprep.subr.mxu0 0.0
        %527 = vmatpush2.msra.mxu0 0.0
        %528 = vmatprep.subr.mxu0 0.0
        %529 = vmatpush2.msra.mxu0 0.0
        %530 = vmatprep.mubr.f32.mxu0 0.0
        %531 = vmatmul.mubr.f32.gmra.mxu0 %v458
        %v532 = vpop.f32.mrf.mxu0
        %v533 = vadd.f32 %v454, %v532
        %v534 = vpop.f32.mrf.mxu0
        %v535 = vadd.f32 %v456, %v534
        %536 = vdwg.mxu0
        %537 = vrot.lane.b32.xlu0 %v341, 15
        %v538 = vpop.permute.xlu0 %537
        %539 = vrot.lane.b32.xlu0 %v343, 15
        %v540 = vpop.permute.xlu0 %539
        %vm541 = vcmp.lt.s32.totalorder %v222, 15
        %v542 = vsel %vm541, %v538, %v540
        %v543 = vsel %vm541, %v540, %v538
        %vm544 = vmand %vm256, %vm248
        %vm545 = vmand %vm257, %vm249
        %v546 = vsel %vm544, 1, 0
        %v547 = vsel %vm545, 1, 0
        %vm548 = vcmp.eq.s32.totalorder %v546, 1
        %vm549 = vcmp.eq.s32.totalorder %v547, 1
        %v550 = vsel %vm548, %v543, 0.0
        %v551 = vsel %vm549, %v542, 0.0
        %552 = vrot.lane.b32.xlu0 %v218, 120
        %v553 = vpop.permute.xlu0 %552
        %v554 = vsel %vm378, %v553, 0
        %v557 = vsel %vm275, %v550, 0
        %v560 = vsel %vm275, %v551, 0
        %562 = vmatprep.subr.mxu0 0.0
        %563 = vmatpush1.msra.mxu0 0.0
        %564 = vmatprep.subr.mxu0 0.0
        %565 = vmatpush1.msra.mxu0 0.0
        %566 = vmatprep.subr.mxu0 0.0
        %567 = vmatpush1.msra.mxu0 0.0
        %568 = vmatprep.subr.mxu0 0.0
        %569 = vmatpush1.msra.mxu0 0.0
        %570 = vmatprep.subr.mxu0 0.0
        %571 = vmatpush1.msra.mxu0 0.0
        %572 = vmatprep.subr.mxu0 0.0
        %573 = vmatpush1.msra.mxu0 0.0
        %574 = vmatprep.subr.mxu0 0.0
        %575 = vmatpush1.msra.mxu0 0.0
        %576 = vmatprep.subr.mxu0 0.0
        %577 = vmatpush1.msra.mxu0 0.0
        %578 = vmatprep.subr.mxu0 0.0
        %579 = vmatpush1.msra.mxu0 0.0
        %580 = vmatprep.subr.mxu0 0.0
        %581 = vmatpush1.msra.mxu0 0.0
        %582 = vmatprep.subr.mxu0 0.0
        %583 = vmatpush1.msra.mxu0 0.0
        %584 = vmatprep.subr.mxu0 0.0
        %585 = vmatpush1.msra.mxu0 0.0
        %586 = vmatprep.subr.mxu0 0.0
        %587 = vmatpush1.msra.mxu0 0.0
        %588 = vmatprep.subr.mxu0 0.0
        %589 = vmatpush1.msra.mxu0 0.0
        %590 = vmatprep.subr.mxu0 0.0
        %591 = vmatpush1.msra.mxu0 0.0
        %592 = vmatprep.subr.mxu0 %v560
        %593 = vmatpush1.msra.mxu0 %v557
        %594 = vmatprep.subr.mxu0 0.0
        %595 = vmatpush2.msra.mxu0 0.0
        %596 = vmatprep.subr.mxu0 0.0
        %597 = vmatpush2.msra.mxu0 0.0
        %598 = vmatprep.subr.mxu0 0.0
        %599 = vmatpush2.msra.mxu0 0.0
        %600 = vmatprep.subr.mxu0 0.0
        %601 = vmatpush2.msra.mxu0 0.0
        %602 = vmatprep.subr.mxu0 0.0
        %603 = vmatpush2.msra.mxu0 0.0
        %604 = vmatprep.subr.mxu0 0.0
        %605 = vmatpush2.msra.mxu0 0.0
        %606 = vmatprep.subr.mxu0 0.0
        %607 = vmatpush2.msra.mxu0 0.0
        %608 = vmatprep.subr.mxu0 0.0
        %609 = vmatpush2.msra.mxu0 0.0
        %610 = vmatprep.subr.mxu0 0.0
        %611 = vmatpush2.msra.mxu0 0.0
        %612 = vmatprep.subr.mxu0 0.0
        %613 = vmatpush2.msra.mxu0 0.0
        %614 = vmatprep.subr.mxu0 0.0
        %615 = vmatpush2.msra.mxu0 0.0
        %616 = vmatprep.subr.mxu0 0.0
        %617 = vmatpush2.msra.mxu0 0.0
        %618 = vmatprep.subr.mxu0 0.0
        %619 = vmatpush2.msra.mxu0 0.0
        %620 = vmatprep.subr.mxu0 0.0
        %621 = vmatpush2.msra.mxu0 0.0
        %622 = vmatprep.subr.mxu0 0.0
        %623 = vmatpush2.msra.mxu0 0.0
        %624 = vmatprep.subr.mxu0 0.0
        %625 = vmatpush2.msra.mxu0 0.0
        %626 = vmatprep.mubr.f32.mxu0 0.0
        %627 = vmatmul.mubr.f32.gmra.mxu0 %v554
        %v628 = vpop.f32.mrf.mxu0
        %v629 = vadd.f32 0.0, %v628
        %v630 = vpop.f32.mrf.mxu0
        %v631 = vadd.f32 0.0, %v630
        %632 = vdwg.mxu0
        %v633 = vadd.f32 %v533, %v629
        %v634 = vadd.f32 %v535, %v631
        %635 = vrot.lane.b32.xlu0 %v341, 1
        %v636 = vpop.permute.xlu0 %635
        %637 = vrot.lane.b32.xlu0 %v343, 1
        %v638 = vpop.permute.xlu0 %637
        %vm639 = vcmp.lt.s32.totalorder %v222, 1
        %v640 = vsel %vm639, %v636, %v638
        %v641 = vsel %vm639, %v638, %v636
        %vm642 = vmand %vm262, %vm234
        %vm643 = vmand %vm263, %vm235
        %v644 = vsel %vm642, 1, 0
        %v645 = vsel %vm643, 1, 0
        %vm646 = vcmp.eq.s32.totalorder %v644, 1
        %vm647 = vcmp.eq.s32.totalorder %v645, 1
        %v648 = vsel %vm646, %v641, 0.0
        %v649 = vsel %vm647, %v640, 0.0
        %650 = vrot.lane.b32.xlu0 %v218, 116
        %v651 = vpop.permute.xlu0 %650
        %v652 = vsel %vm378, %v651, 0
        %v655 = vsel %vm275, %v648, 0
        %v658 = vsel %vm275, %v649, 0
        %660 = vmatprep.subr.mxu0 0.0
        %661 = vmatpush1.msra.mxu0 0.0
        %662 = vmatprep.subr.mxu0 0.0
        %663 = vmatpush1.msra.mxu0 0.0
        %664 = vmatprep.subr.mxu0 0.0
        %665 = vmatpush1.msra.mxu0 0.0
        %666 = vmatprep.subr.mxu0 0.0
        %667 = vmatpush1.msra.mxu0 0.0
        %668 = vmatprep.subr.mxu0 0.0
        %669 = vmatpush1.msra.mxu0 0.0
        %670 = vmatprep.subr.mxu0 0.0
        %671 = vmatpush1.msra.mxu0 0.0
        %672 = vmatprep.subr.mxu0 0.0
        %673 = vmatpush1.msra.mxu0 0.0
        %674 = vmatprep.subr.mxu0 0.0
        %675 = vmatpush1.msra.mxu0 0.0
        %676 = vmatprep.subr.mxu0 0.0
        %677 = vmatpush1.msra.mxu0 0.0
        %678 = vmatprep.subr.mxu0 0.0
        %679 = vmatpush1.msra.mxu0 0.0
        %680 = vmatprep.subr.mxu0 0.0
        %681 = vmatpush1.msra.mxu0 0.0
        %682 = vmatprep.subr.mxu0 0.0
        %683 = vmatpush1.msra.mxu0 0.0
        %684 = vmatprep.subr.mxu0 0.0
        %685 = vmatpush1.msra.mxu0 0.0
        %686 = vmatprep.subr.mxu0 0.0
        %687 = vmatpush1.msra.mxu0 0.0
        %688 = vmatprep.subr.mxu0 0.0
        %689 = vmatpush1.msra.mxu0 0.0
        %690 = vmatprep.subr.mxu0 %v658
        %691 = vmatpush1.msra.mxu0 %v655
        %692 = vmatprep.subr.mxu0 0.0
        %693 = vmatpush2.msra.mxu0 0.0
        %694 = vmatprep.subr.mxu0 0.0
        %695 = vmatpush2.msra.mxu0 0.0
        %696 = vmatprep.subr.mxu0 0.0
        %697 = vmatpush2.msra.mxu0 0.0
        %698 = vmatprep.subr.mxu0 0.0
        %699 = vmatpush2.msra.mxu0 0.0
        %700 = vmatprep.subr.mxu0 0.0
        %701 = vmatpush2.msra.mxu0 0.0
        %702 = vmatprep.subr.mxu0 0.0
        %703 = vmatpush2.msra.mxu0 0.0
        %704 = vmatprep.subr.mxu0 0.0
        %705 = vmatpush2.msra.mxu0 0.0
        %706 = vmatprep.subr.mxu0 0.0
        %707 = vmatpush2.msra.mxu0 0.0
        %708 = vmatprep.subr.mxu0 0.0
        %709 = vmatpush2.msra.mxu0 0.0
        %710 = vmatprep.subr.mxu0 0.0
        %711 = vmatpush2.msra.mxu0 0.0
        %712 = vmatprep.subr.mxu0 0.0
        %713 = vmatpush2.msra.mxu0 0.0
        %714 = vmatprep.subr.mxu0 0.0
        %715 = vmatpush2.msra.mxu0 0.0
        %716 = vmatprep.subr.mxu0 0.0
        %717 = vmatpush2.msra.mxu0 0.0
        %718 = vmatprep.subr.mxu0 0.0
        %719 = vmatpush2.msra.mxu0 0.0
        %720 = vmatprep.subr.mxu0 0.0
        %721 = vmatpush2.msra.mxu0 0.0
        %722 = vmatprep.subr.mxu0 0.0
        %723 = vmatpush2.msra.mxu0 0.0
        %724 = vmatprep.mubr.f32.mxu0 0.0
        %725 = vmatmul.mubr.f32.gmra.mxu0 %v652
        %v726 = vpop.f32.mrf.mxu0
        %v727 = vadd.f32 0.0, %v726
        %v728 = vpop.f32.mrf.mxu0
        %v729 = vadd.f32 0.0, %v728
        %730 = vdwg.mxu0
        %v731 = vadd.f32 %v633, %v727
        %v732 = vadd.f32 %v634, %v729
        %733 = vrot.lane.b32.xlu0 %v218, 112
        %v734 = vpop.permute.xlu0 %733
        %v735 = vsel %vm378, %v734, 0
        %v737 = vsel %vm275, %v341, 0
        %v739 = vsel %vm275, %v343, 0
        %741 = vmatprep.subr.mxu0 0.0
        %742 = vmatpush1.msra.mxu0 0.0
        %743 = vmatprep.subr.mxu0 0.0
        %744 = vmatpush1.msra.mxu0 0.0
        %745 = vmatprep.subr.mxu0 0.0
        %746 = vmatpush1.msra.mxu0 0.0
        %747 = vmatprep.subr.mxu0 0.0
        %748 = vmatpush1.msra.mxu0 0.0
        %749 = vmatprep.subr.mxu0 0.0
        %750 = vmatpush1.msra.mxu0 0.0
        %751 = vmatprep.subr.mxu0 0.0
        %752 = vmatpush1.msra.mxu0 0.0
        %753 = vmatprep.subr.mxu0 0.0
        %754 = vmatpush1.msra.mxu0 0.0
        %755 = vmatprep.subr.mxu0 0.0
        %756 = vmatpush1.msra.mxu0 0.0
        %757 = vmatprep.subr.mxu0 0.0
        %758 = vmatpush1.msra.mxu0 0.0
        %759 = vmatprep.subr.mxu0 0.0
        %760 = vmatpush1.msra.mxu0 0.0
        %761 = vmatprep.subr.mxu0 0.0
        %762 = vmatpush1.msra.mxu0 0.0
        %763 = vmatprep.subr.mxu0 0.0
        %764 = vmatpush1.msra.mxu0 0.0
        %765 = vmatprep.subr.mxu0 0.0
        %766 = vmatpush1.msra.mxu0 0.0
        %767 = vmatprep.subr.mxu0 0.0
        %768 = vmatpush1.msra.mxu0 0.0
        %769 = vmatprep.subr.mxu0 0.0
        %770 = vmatpush1.msra.mxu0 0.0
        %771 = vmatprep.subr.mxu0 %v739
        %772 = vmatpush1.msra.mxu0 %v737
        %773 = vmatprep.subr.mxu0 0.0
        %774 = vmatpush2.msra.mxu0 0.0
        %775 = vmatprep.subr.mxu0 0.0
        %776 = vmatpush2.msra.mxu0 0.0
        %777 = vmatprep.subr.mxu0 0.0
        %778 = vmatpush2.msra.mxu0 0.0
        %779 = vmatprep.subr.mxu0 0.0
        %780 = vmatpush2.msra.mxu0 0.0
        %781 = vmatprep.subr.mxu0 0.0
        %782 = vmatpush2.msra.mxu0 0.0
        %783 = vmatprep.subr.mxu0 0.0
        %784 = vmatpush2.msra.mxu0 0.0
        %785 = vmatprep.subr.mxu0 0.0
        %786 = vmatpush2.msra.mxu0 0.0
        %787 = vmatprep.subr.mxu0 0.0
        %788 = vmatpush2.msra.mxu0 0.0
        %789 = vmatprep.subr.mxu0 0.0
        %790 = vmatpush2.msra.mxu0 0.0
        %791 = vmatprep.subr.mxu0 0.0
        %792 = vmatpush2.msra.mxu0 0.0
        %793 = vmatprep.subr.mxu0 0.0
        %794 = vmatpush2.msra.mxu0 0.0
        %795 = vmatprep.subr.mxu0 0.0
        %796 = vmatpush2.msra.mxu0 0.0
        %797 = vmatprep.subr.mxu0 0.0
        %798 = vmatpush2.msra.mxu0 0.0
        %799 = vmatprep.subr.mxu0 0.0
        %800 = vmatpush2.msra.mxu0 0.0
        %801 = vmatprep.subr.mxu0 0.0
        %802 = vmatpush2.msra.mxu0 0.0
        %803 = vmatprep.subr.mxu0 0.0
        %804 = vmatpush2.msra.mxu0 0.0
        %805 = vmatprep.mubr.f32.mxu0 0.0
        %806 = vmatmul.mubr.f32.gmra.mxu0 %v735
        %v807 = vpop.f32.mrf.mxu0
        %v808 = vadd.f32 0.0, %v807
        %v809 = vpop.f32.mrf.mxu0
        %v810 = vadd.f32 0.0, %v809
        %811 = vdwg.mxu0
        %v812 = vadd.f32 %v731, %v808
        %v813 = vadd.f32 %v732, %v810
        %814 = vrot.lane.b32.xlu0 %v341, 127
        %v815 = vpop.permute.xlu0 %814
        %816 = vrot.lane.b32.xlu0 %v343, 127
        %v817 = vpop.permute.xlu0 %816
        %vm818 = vcmp.lt.s32.totalorder %v222, 127
        %v819 = vsel %vm818, %v815, %v817
        %v820 = vsel %vm818, %v817, %v815
        %vm821 = vmand %vm262, %vm248
        %vm822 = vmand %vm263, %vm249
        %v823 = vsel %vm821, 1, 0
        %v824 = vsel %vm822, 1, 0
        %vm825 = vcmp.eq.s32.totalorder %v823, 1
        %vm826 = vcmp.eq.s32.totalorder %v824, 1
        %v827 = vsel %vm825, %v819, 0.0
        %v828 = vsel %vm826, %v820, 0.0
        %829 = vrot.lane.b32.xlu0 %v218, 108
        %v830 = vpop.permute.xlu0 %829
        %v831 = vsel %vm378, %v830, 0
        %v834 = vsel %vm275, %v827, 0
        %v837 = vsel %vm275, %v828, 0
        %839 = vmatprep.subr.mxu0 0.0
        %840 = vmatpush1.msra.mxu0 0.0
        %841 = vmatprep.subr.mxu0 0.0
        %842 = vmatpush1.msra.mxu0 0.0
        %843 = vmatprep.subr.mxu0 0.0
        %844 = vmatpush1.msra.mxu0 0.0
        %845 = vmatprep.subr.mxu0 0.0
        %846 = vmatpush1.msra.mxu0 0.0
        %847 = vmatprep.subr.mxu0 0.0
        %848 = vmatpush1.msra.mxu0 0.0
        %849 = vmatprep.subr.mxu0 0.0
        %850 = vmatpush1.msra.mxu0 0.0
        %851 = vmatprep.subr.mxu0 0.0
        %852 = vmatpush1.msra.mxu0 0.0
        %853 = vmatprep.subr.mxu0 0.0
        %854 = vmatpush1.msra.mxu0 0.0
        %855 = vmatprep.subr.mxu0 0.0
        %856 = vmatpush1.msra.mxu0 0.0
        %857 = vmatprep.subr.mxu0 0.0
        %858 = vmatpush1.msra.mxu0 0.0
        %859 = vmatprep.subr.mxu0 0.0
        %860 = vmatpush1.msra.mxu0 0.0
        %861 = vmatprep.subr.mxu0 0.0
        %862 = vmatpush1.msra.mxu0 0.0
        %863 = vmatprep.subr.mxu0 0.0
        %864 = vmatpush1.msra.mxu0 0.0
        %865 = vmatprep.subr.mxu0 0.0
        %866 = vmatpush1.msra.mxu0 0.0
        %867 = vmatprep.subr.mxu0 0.0
        %868 = vmatpush1.msra.mxu0 0.0
        %869 = vmatprep.subr.mxu0 %v837
        %870 = vmatpush1.msra.mxu0 %v834
        %871 = vmatprep.subr.mxu0 0.0
        %872 = vmatpush2.msra.mxu0 0.0
        %873 = vmatprep.subr.mxu0 0.0
        %874 = vmatpush2.msra.mxu0 0.0
        %875 = vmatprep.subr.mxu0 0.0
        %876 = vmatpush2.msra.mxu0 0.0
        %877 = vmatprep.subr.mxu0 0.0
        %878 = vmatpush2.msra.mxu0 0.0
        %879 = vmatprep.subr.mxu0 0.0
        %880 = vmatpush2.msra.mxu0 0.0
        %881 = vmatprep.subr.mxu0 0.0
        %882 = vmatpush2.msra.mxu0 0.0
        %883 = vmatprep.subr.mxu0 0.0
        %884 = vmatpush2.msra.mxu0 0.0
        %885 = vmatprep.subr.mxu0 0.0
        %886 = vmatpush2.msra.mxu0 0.0
        %887 = vmatprep.subr.mxu0 0.0
        %888 = vmatpush2.msra.mxu0 0.0
        %889 = vmatprep.subr.mxu0 0.0
        %890 = vmatpush2.msra.mxu0 0.0
        %891 = vmatprep.subr.mxu0 0.0
        %892 = vmatpush2.msra.mxu0 0.0
        %893 = vmatprep.subr.mxu0 0.0
        %894 = vmatpush2.msra.mxu0 0.0
        %895 = vmatprep.subr.mxu0 0.0
        %896 = vmatpush2.msra.mxu0 0.0
        %897 = vmatprep.subr.mxu0 0.0
        %898 = vmatpush2.msra.mxu0 0.0
        %899 = vmatprep.subr.mxu0 0.0
        %900 = vmatpush2.msra.mxu0 0.0
        %901 = vmatprep.subr.mxu0 0.0
        %902 = vmatpush2.msra.mxu0 0.0
        %903 = vmatprep.mubr.f32.mxu0 0.0
        %904 = vmatmul.mubr.f32.gmra.mxu0 %v831
        %v905 = vpop.f32.mrf.mxu0
        %v906 = vadd.f32 0.0, %v905
        %v907 = vpop.f32.mrf.mxu0
        %v908 = vadd.f32 0.0, %v907
        %909 = vdwg.mxu0
        %v910 = vadd.f32 %v812, %v906
        %v911 = vadd.f32 %v813, %v908
        %912 = vrot.lane.b32.xlu0 %v341, 113
        %v913 = vpop.permute.xlu0 %912
        %914 = vrot.lane.b32.xlu0 %v343, 113
        %v915 = vpop.permute.xlu0 %914
        %vm916 = vcmp.lt.s32.totalorder %v222, 113
        %v917 = vsel %vm916, %v913, %v915
        %v918 = vsel %vm916, %v915, %v913
        %vm919 = vmand %vm270, %vm234
        %vm920 = vmand %vm271, %vm235
        %v921 = vsel %vm919, 1, 0
        %v922 = vsel %vm920, 1, 0
        %vm923 = vcmp.eq.s32.totalorder %v921, 1
        %vm924 = vcmp.eq.s32.totalorder %v922, 1
        %v925 = vsel %vm923, %v917, 0.0
        %v926 = vsel %vm924, %v918, 0.0
        %927 = vrot.lane.b32.xlu0 %v218, 104
        %v928 = vpop.permute.xlu0 %927
        %v929 = vsel %vm378, %v928, 0
        %v932 = vsel %vm275, %v925, 0
        %v935 = vsel %vm275, %v926, 0
        %937 = vmatprep.subr.mxu0 0.0
        %938 = vmatpush1.msra.mxu0 0.0
        %939 = vmatprep.subr.mxu0 0.0
        %940 = vmatpush1.msra.mxu0 0.0
        %941 = vmatprep.subr.mxu0 0.0
        %942 = vmatpush1.msra.mxu0 0.0
        %943 = vmatprep.subr.mxu0 0.0
        %944 = vmatpush1.msra.mxu0 0.0
        %945 = vmatprep.subr.mxu0 0.0
        %946 = vmatpush1.msra.mxu0 0.0
        %947 = vmatprep.subr.mxu0 0.0
        %948 = vmatpush1.msra.mxu0 0.0
        %949 = vmatprep.subr.mxu0 0.0
        %950 = vmatpush1.msra.mxu0 0.0
        %951 = vmatprep.subr.mxu0 0.0
        %952 = vmatpush1.msra.mxu0 0.0
        %953 = vmatprep.subr.mxu0 0.0
        %954 = vmatpush1.msra.mxu0 0.0
        %955 = vmatprep.subr.mxu0 0.0
        %956 = vmatpush1.msra.mxu0 0.0
        %957 = vmatprep.subr.mxu0 0.0
        %958 = vmatpush1.msra.mxu0 0.0
        %959 = vmatprep.subr.mxu0 0.0
        %960 = vmatpush1.msra.mxu0 0.0
        %961 = vmatprep.subr.mxu0 0.0
        %962 = vmatpush1.msra.mxu0 0.0
        %963 = vmatprep.subr.mxu0 0.0
        %964 = vmatpush1.msra.mxu0 0.0
        %965 = vmatprep.subr.mxu0 0.0
        %966 = vmatpush1.msra.mxu0 0.0
        %967 = vmatprep.subr.mxu0 %v935
        %968 = vmatpush1.msra.mxu0 %v932
        %969 = vmatprep.subr.mxu0 0.0
        %970 = vmatpush2.msra.mxu0 0.0
        %971 = vmatprep.subr.mxu0 0.0
        %972 = vmatpush2.msra.mxu0 0.0
        %973 = vmatprep.subr.mxu0 0.0
        %974 = vmatpush2.msra.mxu0 0.0
        %975 = vmatprep.subr.mxu0 0.0
        %976 = vmatpush2.msra.mxu0 0.0
        %977 = vmatprep.subr.mxu0 0.0
        %978 = vmatpush2.msra.mxu0 0.0
        %979 = vmatprep.subr.mxu0 0.0
        %980 = vmatpush2.msra.mxu0 0.0
        %981 = vmatprep.subr.mxu0 0.0
        %982 = vmatpush2.msra.mxu0 0.0
        %983 = vmatprep.subr.mxu0 0.0
        %984 = vmatpush2.msra.mxu0 0.0
        %985 = vmatprep.subr.mxu0 0.0
        %986 = vmatpush2.msra.mxu0 0.0
        %987 = vmatprep.subr.mxu0 0.0
        %988 = vmatpush2.msra.mxu0 0.0
        %989 = vmatprep.subr.mxu0 0.0
        %990 = vmatpush2.msra.mxu0 0.0
        %991 = vmatprep.subr.mxu0 0.0
        %992 = vmatpush2.msra.mxu0 0.0
        %993 = vmatprep.subr.mxu0 0.0
        %994 = vmatpush2.msra.mxu0 0.0
        %995 = vmatprep.subr.mxu0 0.0
        %996 = vmatpush2.msra.mxu0 0.0
        %997 = vmatprep.subr.mxu0 0.0
        %998 = vmatpush2.msra.mxu0 0.0
        %999 = vmatprep.subr.mxu0 0.0
        %1000 = vmatpush2.msra.mxu0 0.0
        %1001 = vmatprep.mubr.f32.mxu0 0.0
        %1002 = vmatmul.mubr.f32.gmra.mxu0 %v929
        %v1003 = vpop.f32.mrf.mxu0
        %v1004 = vadd.f32 0.0, %v1003
        %v1005 = vpop.f32.mrf.mxu0
        %v1006 = vadd.f32 0.0, %v1005
        %1007 = vdwg.mxu0
        %v1008 = vadd.f32 %v910, %v1004
        %v1009 = vadd.f32 %v911, %v1006
        %1010 = vrot.lane.b32.xlu0 %v341, 112
        %v1011 = vpop.permute.xlu0 %1010
        %1012 = vrot.lane.b32.xlu0 %v343, 112
        %v1013 = vpop.permute.xlu0 %1012
        %vm1014 = vcmp.lt.s32.totalorder %v222, 112
        %v1015 = vsel %vm1014, %v1011, %v1013
        %v1016 = vsel %vm1014, %v1013, %v1011
        %vm1017 = vmand %vm270, %vm240
        %vm1018 = vmand %vm271, %vm241
        %v1019 = vsel %vm1017, 1, 0
        %v1020 = vsel %vm1018, 1, 0
        %vm1021 = vcmp.eq.s32.totalorder %v1019, 1
        %vm1022 = vcmp.eq.s32.totalorder %v1020, 1
        %v1023 = vsel %vm1021, %v1015, 0.0
        %v1024 = vsel %vm1022, %v1016, 0.0
        %1025 = vrot.lane.b32.xlu0 %v218, 100
        %v1026 = vpop.permute.xlu0 %1025
        %v1027 = vsel %vm378, %v1026, 0
        %v1030 = vsel %vm275, %v1023, 0
        %v1033 = vsel %vm275, %v1024, 0
        %1035 = vmatprep.subr.mxu0 0.0
        %1036 = vmatpush1.msra.mxu0 0.0
        %1037 = vmatprep.subr.mxu0 0.0
        %1038 = vmatpush1.msra.mxu0 0.0
        %1039 = vmatprep.subr.mxu0 0.0
        %1040 = vmatpush1.msra.mxu0 0.0
        %1041 = vmatprep.subr.mxu0 0.0
        %1042 = vmatpush1.msra.mxu0 0.0
        %1043 = vmatprep.subr.mxu0 0.0
        %1044 = vmatpush1.msra.mxu0 0.0
        %1045 = vmatprep.subr.mxu0 0.0
        %1046 = vmatpush1.msra.mxu0 0.0
        %1047 = vmatprep.subr.mxu0 0.0
        %1048 = vmatpush1.msra.mxu0 0.0
        %1049 = vmatprep.subr.mxu0 0.0
        %1050 = vmatpush1.msra.mxu0 0.0
        %1051 = vmatprep.subr.mxu0 0.0
        %1052 = vmatpush1.msra.mxu0 0.0
        %1053 = vmatprep.subr.mxu0 0.0
        %1054 = vmatpush1.msra.mxu0 0.0
        %1055 = vmatprep.subr.mxu0 0.0
        %1056 = vmatpush1.msra.mxu0 0.0
        %1057 = vmatprep.subr.mxu0 0.0
        %1058 = vmatpush1.msra.mxu0 0.0
        %1059 = vmatprep.subr.mxu0 0.0
        %1060 = vmatpush1.msra.mxu0 0.0
        %1061 = vmatprep.subr.mxu0 0.0
        %1062 = vmatpush1.msra.mxu0 0.0
        %1063 = vmatprep.subr.mxu0 0.0
        %1064 = vmatpush1.msra.mxu0 0.0
        %1065 = vmatprep.subr.mxu0 %v1033
        %1066 = vmatpush1.msra.mxu0 %v1030
        %1067 = vmatprep.subr.mxu0 0.0
        %1068 = vmatpush2.msra.mxu0 0.0
        %1069 = vmatprep.subr.mxu0 0.0
        %1070 = vmatpush2.msra.mxu0 0.0
        %1071 = vmatprep.subr.mxu0 0.0
        %1072 = vmatpush2.msra.mxu0 0.0
        %1073 = vmatprep.subr.mxu0 0.0
        %1074 = vmatpush2.msra.mxu0 0.0
        %1075 = vmatprep.subr.mxu0 0.0
        %1076 = vmatpush2.msra.mxu0 0.0
        %1077 = vmatprep.subr.mxu0 0.0
        %1078 = vmatpush2.msra.mxu0 0.0
        %1079 = vmatprep.subr.mxu0 0.0
        %1080 = vmatpush2.msra.mxu0 0.0
        %1081 = vmatprep.subr.mxu0 0.0
        %1082 = vmatpush2.msra.mxu0 0.0
        %1083 = vmatprep.subr.mxu0 0.0
        %1084 = vmatpush2.msra.mxu0 0.0
        %1085 = vmatprep.subr.mxu0 0.0
        %1086 = vmatpush2.msra.mxu0 0.0
        %1087 = vmatprep.subr.mxu0 0.0
        %1088 = vmatpush2.msra.mxu0 0.0
        %1089 = vmatprep.subr.mxu0 0.0
        %1090 = vmatpush2.msra.mxu0 0.0
        %1091 = vmatprep.subr.mxu0 0.0
        %1092 = vmatpush2.msra.mxu0 0.0
        %1093 = vmatprep.subr.mxu0 0.0
        %1094 = vmatpush2.msra.mxu0 0.0
        %1095 = vmatprep.subr.mxu0 0.0
        %1096 = vmatpush2.msra.mxu0 0.0
        %1097 = vmatprep.subr.mxu0 0.0
        %1098 = vmatpush2.msra.mxu0 0.0
        %1099 = vmatprep.mubr.f32.mxu0 0.0
        %1100 = vmatmul.mubr.f32.gmra.mxu0 %v1027
        %v1101 = vpop.f32.mrf.mxu0
        %v1102 = vadd.f32 0.0, %v1101
        %v1103 = vpop.f32.mrf.mxu0
        %v1104 = vadd.f32 0.0, %v1103
        %1105 = vdwg.mxu0
        %v1106 = vadd.f32 %v1008, %v1102
        %v1107 = vadd.f32 %v1009, %v1104
        %1108 = vrot.lane.b32.xlu0 %v341, 111
        %v1109 = vpop.permute.xlu0 %1108
        %1110 = vrot.lane.b32.xlu0 %v343, 111
        %v1111 = vpop.permute.xlu0 %1110
        %vm1112 = vcmp.lt.s32.totalorder %v222, 111
        %v1113 = vsel %vm1112, %v1109, %v1111
        %v1114 = vsel %vm1112, %v1111, %v1109
        %vm1115 = vmand %vm270, %vm248
        %vm1116 = vmand %vm271, %vm249
        %v1117 = vsel %vm1115, 1, 0
        %v1118 = vsel %vm1116, 1, 0
        %vm1119 = vcmp.eq.s32.totalorder %v1117, 1
        %vm1120 = vcmp.eq.s32.totalorder %v1118, 1
        %v1121 = vsel %vm1119, %v1113, 0.0
        %v1122 = vsel %vm1120, %v1114, 0.0
        %1123 = vrot.lane.b32.xlu0 %v218, 96
        %v1124 = vpop.permute.xlu0 %1123
        %v1125 = vsel %vm378, %v1124, 0
        %v1128 = vsel %vm275, %v1121, 0
        %v1131 = vsel %vm275, %v1122, 0
        %1133 = vmatprep.subr.mxu0 0.0
        %1134 = vmatpush1.msra.mxu0 0.0
        %1135 = vmatprep.subr.mxu0 0.0
        %1136 = vmatpush1.msra.mxu0 0.0
        %1137 = vmatprep.subr.mxu0 0.0
        %1138 = vmatpush1.msra.mxu0 0.0
        %1139 = vmatprep.subr.mxu0 0.0
        %1140 = vmatpush1.msra.mxu0 0.0
        %1141 = vmatprep.subr.mxu0 0.0
        %1142 = vmatpush1.msra.mxu0 0.0
        %1143 = vmatprep.subr.mxu0 0.0
        %1144 = vmatpush1.msra.mxu0 0.0
        %1145 = vmatprep.subr.mxu0 0.0
        %1146 = vmatpush1.msra.mxu0 0.0
        %1147 = vmatprep.subr.mxu0 0.0
        %1148 = vmatpush1.msra.mxu0 0.0
        %1149 = vmatprep.subr.mxu0 0.0
        %1150 = vmatpush1.msra.mxu0 0.0
        %1151 = vmatprep.subr.mxu0 0.0
        %1152 = vmatpush1.msra.mxu0 0.0
        %1153 = vmatprep.subr.mxu0 0.0
        %1154 = vmatpush1.msra.mxu0 0.0
        %1155 = vmatprep.subr.mxu0 0.0
        %1156 = vmatpush1.msra.mxu0 0.0
        %1157 = vmatprep.subr.mxu0 0.0
        %1158 = vmatpush1.msra.mxu0 0.0
        %1159 = vmatprep.subr.mxu0 0.0
        %1160 = vmatpush1.msra.mxu0 0.0
        %1161 = vmatprep.subr.mxu0 0.0
        %1162 = vmatpush1.msra.mxu0 0.0
        %1163 = vmatprep.subr.mxu0 %v1131
        %1164 = vmatpush1.msra.mxu0 %v1128
        %1165 = vmatprep.subr.mxu0 0.0
        %1166 = vmatpush2.msra.mxu0 0.0
        %1167 = vmatprep.subr.mxu0 0.0
        %1168 = vmatpush2.msra.mxu0 0.0
        %1169 = vmatprep.subr.mxu0 0.0
        %1170 = vmatpush2.msra.mxu0 0.0
        %1171 = vmatprep.subr.mxu0 0.0
        %1172 = vmatpush2.msra.mxu0 0.0
        %1173 = vmatprep.subr.mxu0 0.0
        %1174 = vmatpush2.msra.mxu0 0.0
        %1175 = vmatprep.subr.mxu0 0.0
        %1176 = vmatpush2.msra.mxu0 0.0
        %1177 = vmatprep.subr.mxu0 0.0
        %1178 = vmatpush2.msra.mxu0 0.0
        %1179 = vmatprep.subr.mxu0 0.0
        %1180 = vmatpush2.msra.mxu0 0.0
        %1181 = vmatprep.subr.mxu0 0.0
        %1182 = vmatpush2.msra.mxu0 0.0
        %1183 = vmatprep.subr.mxu0 0.0
        %1184 = vmatpush2.msra.mxu0 0.0
        %1185 = vmatprep.subr.mxu0 0.0
        %1186 = vmatpush2.msra.mxu0 0.0
        %1187 = vmatprep.subr.mxu0 0.0
        %1188 = vmatpush2.msra.mxu0 0.0
        %1189 = vmatprep.subr.mxu0 0.0
        %1190 = vmatpush2.msra.mxu0 0.0
        %1191 = vmatprep.subr.mxu0 0.0
        %1192 = vmatpush2.msra.mxu0 0.0
        %1193 = vmatprep.subr.mxu0 0.0
        %1194 = vmatpush2.msra.mxu0 0.0
        %1195 = vmatprep.subr.mxu0 0.0
        %1196 = vmatpush2.msra.mxu0 0.0
        %1197 = vmatprep.mubr.f32.mxu0 0.0
        %1198 = vmatmul.mubr.f32.gmra.mxu0 %v1125
        %v1199 = vpop.f32.mrf.mxu0
        %v1200 = vadd.f32 0.0, %v1199
        %v1201 = vpop.f32.mrf.mxu0
        %v1202 = vadd.f32 0.0, %v1201
        %1203 = vdwg.mxu0
        %v1204 = vadd.f32 %v1106, %v1200
        %v1205 = vadd.f32 %v1107, %v1202
        %v1206 = vsel %vm275, %v1204, 0.0
        %v1207 = vsel %vm275, %v1205, 0.0
        %v1208 = vadd.f32 %v1206, %v1207
        %1209 = vadd.xlane.f32.xlu0 %v1208
        %v1210 = vpop.xlane.xlu0 %1209
        %v1211 = vmul.f32 %v1210, 0.00390625
        %v1212 = vsub.f32 %v1204, %v1211
        %v1213 = vsub.f32 %v1205, %v1211
        %v1214 = vmul.f32 %v1212, %v1212
        %v1215 = vmul.f32 %v1213, %v1213
        %v1216 = vsel %vm275, %v1214, 0.0
        %v1217 = vsel %vm275, %v1215, 0.0
        %v1218 = vadd.f32 %v1216, %v1217
        %1219 = vadd.xlane.f32.xlu0 %v1218
        %v1220 = vpop.xlane.xlu0 %1219
        %v1221 = vmul.f32 %v1220, 0.00390625
        %v1222 = vadd.f32 %v1221, 1e-05
        %v1223 = vrsqrt.pop %v1222
        %v1224 = vmul.f32 %v1212, %v1223
        %v1225 = vmul.f32 %v1213, %v1223
        %1226 = vset.pattern.permute.xlu0 2
        %1227 = vperm.xlu0 %1226, %v217
        %v1228 = vpop.permute.xlu0 %1227
        %v1230 = vmul.f32 %v1224, %v1228
        %v1231 = vmul.f32 %v1225, %v1228
        %1232 = vset.pattern.permute.xlu0 3
        %1233 = vperm.xlu0 %1232, %v217
        %v1234 = vpop.permute.xlu0 %1233
        %v1236 = vadd.f32 %v1230, %v1234
        %v1237 = vadd.f32 %v1231, %v1234
        %vm1238 = vcmp.gt.f32.partialorder %v1236, 0.0
        %vm1239 = vcmp.gt.f32.partialorder %v1237, 0.0
        %v1240 = vmul.f32 %v1236, 0.2
        %v1241 = vmul.f32 %v1237, 0.2
        %v1242 = vsel %vm1238, %v1236, %v1240
        %v1243 = vsel %vm1239, %v1237, %v1241
        %1244 = vrot.lane.b32.xlu0 %v1242, 17
        %v1245 = vpop.permute.xlu0 %1244
        %1246 = vrot.lane.b32.xlu0 %v1243, 17
        %v1247 = vpop.permute.xlu0 %1246
        %v1248 = vsel %vm349, %v1245, %v1247
        %v1249 = vsel %vm349, %v1247, %v1245
        %v1250 = vsel %vm356, %v1249, 0.0
        %v1251 = vsel %vm357, %v1248, 0.0
        %1252 = vrot.lane.b32.xlu0 %v1242, 16
        %v1253 = vpop.permute.xlu0 %1252
        %1254 = vrot.lane.b32.xlu0 %v1243, 16
        %v1255 = vpop.permute.xlu0 %1254
        %v1256 = vsel %vm364, %v1253, %v1255
        %v1257 = vsel %vm364, %v1255, %v1253
        %v1258 = vsel %vm371, %v1257, 0.0
        %v1259 = vsel %vm372, %v1256, 0.0
        %1261 = vrot.lane.b32.xlu0 %v220, 124
        %v1262 = vpop.permute.xlu0 %1261
        %v1263 = vsel %vm378, %v1262, 0
        %v1266 = vsel %vm275, %v1258, 0
        %v1269 = vsel %vm275, %v1259, 0
        %1271 = vmatprep.subr.mxu0 0.0
        %1272 = vmatpush1.msra.mxu0 0.0
        %1273 = vmatprep.subr.mxu0 0.0
        %1274 = vmatpush1.msra.mxu0 0.0
        %1275 = vmatprep.subr.mxu0 0.0
        %1276 = vmatpush1.msra.mxu0 0.0
        %1277 = vmatprep.subr.mxu0 0.0
        %1278 = vmatpush1.msra.mxu0 0.0
        %1279 = vmatprep.subr.mxu0 0.0
        %1280 = vmatpush1.msra.mxu0 0.0
        %1281 = vmatprep.subr.mxu0 0.0
        %1282 = vmatpush1.msra.mxu0 0.0
        %1283 = vmatprep.subr.mxu0 0.0
        %1284 = vmatpush1.msra.mxu0 0.0
        %1285 = vmatprep.subr.mxu0 0.0
        %1286 = vmatpush1.msra.mxu0 0.0
        %1287 = vmatprep.subr.mxu0 0.0
        %1288 = vmatpush1.msra.mxu0 0.0
        %1289 = vmatprep.subr.mxu0 0.0
        %1290 = vmatpush1.msra.mxu0 0.0
        %1291 = vmatprep.subr.mxu0 0.0
        %1292 = vmatpush1.msra.mxu0 0.0
        %1293 = vmatprep.subr.mxu0 0.0
        %1294 = vmatpush1.msra.mxu0 0.0
        %1295 = vmatprep.subr.mxu0 0.0
        %1296 = vmatpush1.msra.mxu0 0.0
        %1297 = vmatprep.subr.mxu0 0.0
        %1298 = vmatpush1.msra.mxu0 0.0
        %1299 = vmatprep.subr.mxu0 0.0
        %1300 = vmatpush1.msra.mxu0 0.0
        %1301 = vmatprep.subr.mxu0 %v1269
        %1302 = vmatpush1.msra.mxu0 %v1266
        %1303 = vmatprep.subr.mxu0 0.0
        %1304 = vmatpush2.msra.mxu0 0.0
        %1305 = vmatprep.subr.mxu0 0.0
        %1306 = vmatpush2.msra.mxu0 0.0
        %1307 = vmatprep.subr.mxu0 0.0
        %1308 = vmatpush2.msra.mxu0 0.0
        %1309 = vmatprep.subr.mxu0 0.0
        %1310 = vmatpush2.msra.mxu0 0.0
        %1311 = vmatprep.subr.mxu0 0.0
        %1312 = vmatpush2.msra.mxu0 0.0
        %1313 = vmatprep.subr.mxu0 0.0
        %1314 = vmatpush2.msra.mxu0 0.0
        %1315 = vmatprep.subr.mxu0 0.0
        %1316 = vmatpush2.msra.mxu0 0.0
        %1317 = vmatprep.subr.mxu0 0.0
        %1318 = vmatpush2.msra.mxu0 0.0
        %1319 = vmatprep.subr.mxu0 0.0
        %1320 = vmatpush2.msra.mxu0 0.0
        %1321 = vmatprep.subr.mxu0 0.0
        %1322 = vmatpush2.msra.mxu0 0.0
        %1323 = vmatprep.subr.mxu0 0.0
        %1324 = vmatpush2.msra.mxu0 0.0
        %1325 = vmatprep.subr.mxu0 0.0
        %1326 = vmatpush2.msra.mxu0 0.0
        %1327 = vmatprep.subr.mxu0 0.0
        %1328 = vmatpush2.msra.mxu0 0.0
        %1329 = vmatprep.subr.mxu0 0.0
        %1330 = vmatpush2.msra.mxu0 0.0
        %1331 = vmatprep.subr.mxu0 0.0
        %1332 = vmatpush2.msra.mxu0 0.0
        %1333 = vmatprep.subr.mxu0 0.0
        %1334 = vmatpush2.msra.mxu0 0.0
        %1335 = vmatprep.mubr.f32.mxu0 0.0
        %1336 = vmatmul.mubr.f32.gmra.mxu0 %v1263
        %v1337 = vpop.f32.mrf.mxu0
        %v1338 = vadd.f32 0.0, %v1337
        %v1339 = vpop.f32.mrf.mxu0
        %v1340 = vadd.f32 0.0, %v1339
        %1341 = vdwg.mxu0
        %v1342 = vsel %vm378, %v220, 0
        %v1345 = vsel %vm275, %v1250, 0
        %v1348 = vsel %vm275, %v1251, 0
        %1350 = vmatprep.subr.mxu0 0.0
        %1351 = vmatpush1.msra.mxu0 0.0
        %1352 = vmatprep.subr.mxu0 0.0
        %1353 = vmatpush1.msra.mxu0 0.0
        %1354 = vmatprep.subr.mxu0 0.0
        %1355 = vmatpush1.msra.mxu0 0.0
        %1356 = vmatprep.subr.mxu0 0.0
        %1357 = vmatpush1.msra.mxu0 0.0
        %1358 = vmatprep.subr.mxu0 0.0
        %1359 = vmatpush1.msra.mxu0 0.0
        %1360 = vmatprep.subr.mxu0 0.0
        %1361 = vmatpush1.msra.mxu0 0.0
        %1362 = vmatprep.subr.mxu0 0.0
        %1363 = vmatpush1.msra.mxu0 0.0
        %1364 = vmatprep.subr.mxu0 0.0
        %1365 = vmatpush1.msra.mxu0 0.0
        %1366 = vmatprep.subr.mxu0 0.0
        %1367 = vmatpush1.msra.mxu0 0.0
        %1368 = vmatprep.subr.mxu0 0.0
        %1369 = vmatpush1.msra.mxu0 0.0
        %1370 = vmatprep.subr.mxu0 0.0
        %1371 = vmatpush1.msra.mxu0 0.0
        %1372 = vmatprep.subr.mxu0 0.0
        %1373 = vmatpush1.msra.mxu0 0.0
        %1374 = vmatprep.subr.mxu0 0.0
        %1375 = vmatpush1.msra.mxu0 0.0
        %1376 = vmatprep.subr.mxu0 0.0
        %1377 = vmatpush1.msra.mxu0 0.0
        %1378 = vmatprep.subr.mxu0 0.0
        %1379 = vmatpush1.msra.mxu0 0.0
        %1380 = vmatprep.subr.mxu0 %v1348
        %1381 = vmatpush1.msra.mxu0 %v1345
        %1382 = vmatprep.subr.mxu0 0.0
        %1383 = vmatpush2.msra.mxu0 0.0
        %1384 = vmatprep.subr.mxu0 0.0
        %1385 = vmatpush2.msra.mxu0 0.0
        %1386 = vmatprep.subr.mxu0 0.0
        %1387 = vmatpush2.msra.mxu0 0.0
        %1388 = vmatprep.subr.mxu0 0.0
        %1389 = vmatpush2.msra.mxu0 0.0
        %1390 = vmatprep.subr.mxu0 0.0
        %1391 = vmatpush2.msra.mxu0 0.0
        %1392 = vmatprep.subr.mxu0 0.0
        %1393 = vmatpush2.msra.mxu0 0.0
        %1394 = vmatprep.subr.mxu0 0.0
        %1395 = vmatpush2.msra.mxu0 0.0
        %1396 = vmatprep.subr.mxu0 0.0
        %1397 = vmatpush2.msra.mxu0 0.0
        %1398 = vmatprep.subr.mxu0 0.0
        %1399 = vmatpush2.msra.mxu0 0.0
        %1400 = vmatprep.subr.mxu0 0.0
        %1401 = vmatpush2.msra.mxu0 0.0
        %1402 = vmatprep.subr.mxu0 0.0
        %1403 = vmatpush2.msra.mxu0 0.0
        %1404 = vmatprep.subr.mxu0 0.0
        %1405 = vmatpush2.msra.mxu0 0.0
        %1406 = vmatprep.subr.mxu0 0.0
        %1407 = vmatpush2.msra.mxu0 0.0
        %1408 = vmatprep.subr.mxu0 0.0
        %1409 = vmatpush2.msra.mxu0 0.0
        %1410 = vmatprep.subr.mxu0 0.0
        %1411 = vmatpush2.msra.mxu0 0.0
        %1412 = vmatprep.subr.mxu0 0.0
        %1413 = vmatpush2.msra.mxu0 0.0
        %1414 = vmatprep.mubr.f32.mxu0 0.0
        %1415 = vmatmul.mubr.f32.gmra.mxu0 %v1342
        %v1416 = vpop.f32.mrf.mxu0
        %v1417 = vadd.f32 %v1338, %v1416
        %v1418 = vpop.f32.mrf.mxu0
        %v1419 = vadd.f32 %v1340, %v1418
        %1420 = vdwg.mxu0
        %1421 = vrot.lane.b32.xlu0 %v1242, 15
        %v1422 = vpop.permute.xlu0 %1421
        %1423 = vrot.lane.b32.xlu0 %v1243, 15
        %v1424 = vpop.permute.xlu0 %1423
        %v1425 = vsel %vm541, %v1422, %v1424
        %v1426 = vsel %vm541, %v1424, %v1422
        %v1427 = vsel %vm548, %v1426, 0.0
        %v1428 = vsel %vm549, %v1425, 0.0
        %1429 = vrot.lane.b32.xlu0 %v220, 120
        %v1430 = vpop.permute.xlu0 %1429
        %v1431 = vsel %vm378, %v1430, 0
        %v1434 = vsel %vm275, %v1427, 0
        %v1437 = vsel %vm275, %v1428, 0
        %1439 = vmatprep.subr.mxu0 0.0
        %1440 = vmatpush1.msra.mxu0 0.0
        %1441 = vmatprep.subr.mxu0 0.0
        %1442 = vmatpush1.msra.mxu0 0.0
        %1443 = vmatprep.subr.mxu0 0.0
        %1444 = vmatpush1.msra.mxu0 0.0
        %1445 = vmatprep.subr.mxu0 0.0
        %1446 = vmatpush1.msra.mxu0 0.0
        %1447 = vmatprep.subr.mxu0 0.0
        %1448 = vmatpush1.msra.mxu0 0.0
        %1449 = vmatprep.subr.mxu0 0.0
        %1450 = vmatpush1.msra.mxu0 0.0
        %1451 = vmatprep.subr.mxu0 0.0
        %1452 = vmatpush1.msra.mxu0 0.0
        %1453 = vmatprep.subr.mxu0 0.0
        %1454 = vmatpush1.msra.mxu0 0.0
        %1455 = vmatprep.subr.mxu0 0.0
        %1456 = vmatpush1.msra.mxu0 0.0
        %1457 = vmatprep.subr.mxu0 0.0
        %1458 = vmatpush1.msra.mxu0 0.0
        %1459 = vmatprep.subr.mxu0 0.0
        %1460 = vmatpush1.msra.mxu0 0.0
        %1461 = vmatprep.subr.mxu0 0.0
        %1462 = vmatpush1.msra.mxu0 0.0
        %1463 = vmatprep.subr.mxu0 0.0
        %1464 = vmatpush1.msra.mxu0 0.0
        %1465 = vmatprep.subr.mxu0 0.0
        %1466 = vmatpush1.msra.mxu0 0.0
        %1467 = vmatprep.subr.mxu0 0.0
        %1468 = vmatpush1.msra.mxu0 0.0
        %1469 = vmatprep.subr.mxu0 %v1437
        %1470 = vmatpush1.msra.mxu0 %v1434
        %1471 = vmatprep.subr.mxu0 0.0
        %1472 = vmatpush2.msra.mxu0 0.0
        %1473 = vmatprep.subr.mxu0 0.0
        %1474 = vmatpush2.msra.mxu0 0.0
        %1475 = vmatprep.subr.mxu0 0.0
        %1476 = vmatpush2.msra.mxu0 0.0
        %1477 = vmatprep.subr.mxu0 0.0
        %1478 = vmatpush2.msra.mxu0 0.0
        %1479 = vmatprep.subr.mxu0 0.0
        %1480 = vmatpush2.msra.mxu0 0.0
        %1481 = vmatprep.subr.mxu0 0.0
        %1482 = vmatpush2.msra.mxu0 0.0
        %1483 = vmatprep.subr.mxu0 0.0
        %1484 = vmatpush2.msra.mxu0 0.0
        %1485 = vmatprep.subr.mxu0 0.0
        %1486 = vmatpush2.msra.mxu0 0.0
        %1487 = vmatprep.subr.mxu0 0.0
        %1488 = vmatpush2.msra.mxu0 0.0
        %1489 = vmatprep.subr.mxu0 0.0
        %1490 = vmatpush2.msra.mxu0 0.0
        %1491 = vmatprep.subr.mxu0 0.0
        %1492 = vmatpush2.msra.mxu0 0.0
        %1493 = vmatprep.subr.mxu0 0.0
        %1494 = vmatpush2.msra.mxu0 0.0
        %1495 = vmatprep.subr.mxu0 0.0
        %1496 = vmatpush2.msra.mxu0 0.0
        %1497 = vmatprep.subr.mxu0 0.0
        %1498 = vmatpush2.msra.mxu0 0.0
        %1499 = vmatprep.subr.mxu0 0.0
        %1500 = vmatpush2.msra.mxu0 0.0
        %1501 = vmatprep.subr.mxu0 0.0
        %1502 = vmatpush2.msra.mxu0 0.0
        %1503 = vmatprep.mubr.f32.mxu0 0.0
        %1504 = vmatmul.mubr.f32.gmra.mxu0 %v1431
        %v1505 = vpop.f32.mrf.mxu0
        %v1506 = vadd.f32 0.0, %v1505
        %v1507 = vpop.f32.mrf.mxu0
        %v1508 = vadd.f32 0.0, %v1507
        %1509 = vdwg.mxu0
        %v1510 = vadd.f32 %v1417, %v1506
        %v1511 = vadd.f32 %v1419, %v1508
        %1512 = vrot.lane.b32.xlu0 %v1242, 1
        %v1513 = vpop.permute.xlu0 %1512
        %1514 = vrot.lane.b32.xlu0 %v1243, 1
        %v1515 = vpop.permute.xlu0 %1514
        %v1516 = vsel %vm639, %v1513, %v1515
        %v1517 = vsel %vm639, %v1515, %v1513
        %v1518 = vsel %vm646, %v1517, 0.0
        %v1519 = vsel %vm647, %v1516, 0.0
        %1520 = vrot.lane.b32.xlu0 %v220, 116
        %v1521 = vpop.permute.xlu0 %1520
        %v1522 = vsel %vm378, %v1521, 0
        %v1525 = vsel %vm275, %v1518, 0
        %v1528 = vsel %vm275, %v1519, 0
        %1530 = vmatprep.subr.mxu0 0.0
        %1531 = vmatpush1.msra.mxu0 0.0
        %1532 = vmatprep.subr.mxu0 0.0
        %1533 = vmatpush1.msra.mxu0 0.0
        %1534 = vmatprep.subr.mxu0 0.0
        %1535 = vmatpush1.msra.mxu0 0.0
        %1536 = vmatprep.subr.mxu0 0.0
        %1537 = vmatpush1.msra.mxu0 0.0
        %1538 = vmatprep.subr.mxu0 0.0
        %1539 = vmatpush1.msra.mxu0 0.0
        %1540 = vmatprep.subr.mxu0 0.0
        %1541 = vmatpush1.msra.mxu0 0.0
        %1542 = vmatprep.subr.mxu0 0.0
        %1543 = vmatpush1.msra.mxu0 0.0
        %1544 = vmatprep.subr.mxu0 0.0
        %1545 = vmatpush1.msra.mxu0 0.0
        %1546 = vmatprep.subr.mxu0 0.0
        %1547 = vmatpush1.msra.mxu0 0.0
        %1548 = vmatprep.subr.mxu0 0.0
        %1549 = vmatpush1.msra.mxu0 0.0
        %1550 = vmatprep.subr.mxu0 0.0
        %1551 = vmatpush1.msra.mxu0 0.0
        %1552 = vmatprep.subr.mxu0 0.0
        %1553 = vmatpush1.msra.mxu0 0.0
        %1554 = vmatprep.subr.mxu0 0.0
        %1555 = vmatpush1.msra.mxu0 0.0
        %1556 = vmatprep.subr.mxu0 0.0
        %1557 = vmatpush1.msra.mxu0 0.0
        %1558 = vmatprep.subr.mxu0 0.0
        %1559 = vmatpush1.msra.mxu0 0.0
        %1560 = vmatprep.subr.mxu0 %v1528
        %1561 = vmatpush1.msra.mxu0 %v1525
        %1562 = vmatprep.subr.mxu0 0.0
        %1563 = vmatpush2.msra.mxu0 0.0
        %1564 = vmatprep.subr.mxu0 0.0
        %1565 = vmatpush2.msra.mxu0 0.0
        %1566 = vmatprep.subr.mxu0 0.0
        %1567 = vmatpush2.msra.mxu0 0.0
        %1568 = vmatprep.subr.mxu0 0.0
        %1569 = vmatpush2.msra.mxu0 0.0
        %1570 = vmatprep.subr.mxu0 0.0
        %1571 = vmatpush2.msra.mxu0 0.0
        %1572 = vmatprep.subr.mxu0 0.0
        %1573 = vmatpush2.msra.mxu0 0.0
        %1574 = vmatprep.subr.mxu0 0.0
        %1575 = vmatpush2.msra.mxu0 0.0
        %1576 = vmatprep.subr.mxu0 0.0
        %1577 = vmatpush2.msra.mxu0 0.0
        %1578 = vmatprep.subr.mxu0 0.0
        %1579 = vmatpush2.msra.mxu0 0.0
        %1580 = vmatprep.subr.mxu0 0.0
        %1581 = vmatpush2.msra.mxu0 0.0
        %1582 = vmatprep.subr.mxu0 0.0
        %1583 = vmatpush2.msra.mxu0 0.0
        %1584 = vmatprep.subr.mxu0 0.0
        %1585 = vmatpush2.msra.mxu0 0.0
        %1586 = vmatprep.subr.mxu0 0.0
        %1587 = vmatpush2.msra.mxu0 0.0
        %1588 = vmatprep.subr.mxu0 0.0
        %1589 = vmatpush2.msra.mxu0 0.0
        %1590 = vmatprep.subr.mxu0 0.0
        %1591 = vmatpush2.msra.mxu0 0.0
        %1592 = vmatprep.subr.mxu0 0.0
        %1593 = vmatpush2.msra.mxu0 0.0
        %1594 = vmatprep.mubr.f32.mxu0 0.0
        %1595 = vmatmul.mubr.f32.gmra.mxu0 %v1522
        %v1596 = vpop.f32.mrf.mxu0
        %v1597 = vadd.f32 0.0, %v1596
        %v1598 = vpop.f32.mrf.mxu0
        %v1599 = vadd.f32 0.0, %v1598
        %1600 = vdwg.mxu0
        %v1601 = vadd.f32 %v1510, %v1597
        %v1602 = vadd.f32 %v1511, %v1599
        %1603 = vrot.lane.b32.xlu0 %v220, 112
        %v1604 = vpop.permute.xlu0 %1603
        %v1605 = vsel %vm378, %v1604, 0
        %v1608 = vsel %vm275, %v1242, 0
        %v1611 = vsel %vm275, %v1243, 0
        %1613 = vmatprep.subr.mxu0 0.0
        %1614 = vmatpush1.msra.mxu0 0.0
        %1615 = vmatprep.subr.mxu0 0.0
        %1616 = vmatpush1.msra.mxu0 0.0
        %1617 = vmatprep.subr.mxu0 0.0
        %1618 = vmatpush1.msra.mxu0 0.0
        %1619 = vmatprep.subr.mxu0 0.0
        %1620 = vmatpush1.msra.mxu0 0.0
        %1621 = vmatprep.subr.mxu0 0.0
        %1622 = vmatpush1.msra.mxu0 0.0
        %1623 = vmatprep.subr.mxu0 0.0
        %1624 = vmatpush1.msra.mxu0 0.0
        %1625 = vmatprep.subr.mxu0 0.0
        %1626 = vmatpush1.msra.mxu0 0.0
        %1627 = vmatprep.subr.mxu0 0.0
        %1628 = vmatpush1.msra.mxu0 0.0
        %1629 = vmatprep.subr.mxu0 0.0
        %1630 = vmatpush1.msra.mxu0 0.0
        %1631 = vmatprep.subr.mxu0 0.0
        %1632 = vmatpush1.msra.mxu0 0.0
        %1633 = vmatprep.subr.mxu0 0.0
        %1634 = vmatpush1.msra.mxu0 0.0
        %1635 = vmatprep.subr.mxu0 0.0
        %1636 = vmatpush1.msra.mxu0 0.0
        %1637 = vmatprep.subr.mxu0 0.0
        %1638 = vmatpush1.msra.mxu0 0.0
        %1639 = vmatprep.subr.mxu0 0.0
        %1640 = vmatpush1.msra.mxu0 0.0
        %1641 = vmatprep.subr.mxu0 0.0
        %1642 = vmatpush1.msra.mxu0 0.0
        %1643 = vmatprep.subr.mxu0 %v1611
        %1644 = vmatpush1.msra.mxu0 %v1608
        %1645 = vmatprep.subr.mxu0 0.0
        %1646 = vmatpush2.msra.mxu0 0.0
        %1647 = vmatprep.subr.mxu0 0.0
        %1648 = vmatpush2.msra.mxu0 0.0
        %1649 = vmatprep.subr.mxu0 0.0
        %1650 = vmatpush2.msra.mxu0 0.0
        %1651 = vmatprep.subr.mxu0 0.0
        %1652 = vmatpush2.msra.mxu0 0.0
        %1653 = vmatprep.subr.mxu0 0.0
        %1654 = vmatpush2.msra.mxu0 0.0
        %1655 = vmatprep.subr.mxu0 0.0
        %1656 = vmatpush2.msra.mxu0 0.0
        %1657 = vmatprep.subr.mxu0 0.0
        %1658 = vmatpush2.msra.mxu0 0.0
        %1659 = vmatprep.subr.mxu0 0.0
        %1660 = vmatpush2.msra.mxu0 0.0
        %1661 = vmatprep.subr.mxu0 0.0
        %1662 = vmatpush2.msra.mxu0 0.0
        %1663 = vmatprep.subr.mxu0 0.0
        %1664 = vmatpush2.msra.mxu0 0.0
        %1665 = vmatprep.subr.mxu0 0.0
        %1666 = vmatpush2.msra.mxu0 0.0
        %1667 = vmatprep.subr.mxu0 0.0
        %1668 = vmatpush2.msra.mxu0 0.0
        %1669 = vmatprep.subr.mxu0 0.0
        %1670 = vmatpush2.msra.mxu0 0.0
        %1671 = vmatprep.subr.mxu0 0.0
        %1672 = vmatpush2.msra.mxu0 0.0
        %1673 = vmatprep.subr.mxu0 0.0
        %1674 = vmatpush2.msra.mxu0 0.0
        %1675 = vmatprep.subr.mxu0 0.0
        %1676 = vmatpush2.msra.mxu0 0.0
        %1677 = vmatprep.mubr.f32.mxu0 0.0
        %1678 = vmatmul.mubr.f32.gmra.mxu0 %v1605
        %v1679 = vpop.f32.mrf.mxu0
        %v1680 = vadd.f32 0.0, %v1679
        %v1681 = vpop.f32.mrf.mxu0
        %v1682 = vadd.f32 0.0, %v1681
        %1683 = vdwg.mxu0
        %v1684 = vadd.f32 %v1601, %v1680
        %v1685 = vadd.f32 %v1602, %v1682
        %1686 = vrot.lane.b32.xlu0 %v1242, 127
        %v1687 = vpop.permute.xlu0 %1686
        %1688 = vrot.lane.b32.xlu0 %v1243, 127
        %v1689 = vpop.permute.xlu0 %1688
        %v1690 = vsel %vm818, %v1687, %v1689
        %v1691 = vsel %vm818, %v1689, %v1687
        %v1692 = vsel %vm825, %v1690, 0.0
        %v1693 = vsel %vm826, %v1691, 0.0
        %1694 = vrot.lane.b32.xlu0 %v220, 108
        %v1695 = vpop.permute.xlu0 %1694
        %v1696 = vsel %vm378, %v1695, 0
        %v1699 = vsel %vm275, %v1692, 0
        %v1702 = vsel %vm275, %v1693, 0
        %1704 = vmatprep.subr.mxu0 0.0
        %1705 = vmatpush1.msra.mxu0 0.0
        %1706 = vmatprep.subr.mxu0 0.0
        %1707 = vmatpush1.msra.mxu0 0.0
        %1708 = vmatprep.subr.mxu0 0.0
        %1709 = vmatpush1.msra.mxu0 0.0
        %1710 = vmatprep.subr.mxu0 0.0
        %1711 = vmatpush1.msra.mxu0 0.0
        %1712 = vmatprep.subr.mxu0 0.0
        %1713 = vmatpush1.msra.mxu0 0.0
        %1714 = vmatprep.subr.mxu0 0.0
        %1715 = vmatpush1.msra.mxu0 0.0
        %1716 = vmatprep.subr.mxu0 0.0
        %1717 = vmatpush1.msra.mxu0 0.0
        %1718 = vmatprep.subr.mxu0 0.0
        %1719 = vmatpush1.msra.mxu0 0.0
        %1720 = vmatprep.subr.mxu0 0.0
        %1721 = vmatpush1.msra.mxu0 0.0
        %1722 = vmatprep.subr.mxu0 0.0
        %1723 = vmatpush1.msra.mxu0 0.0
        %1724 = vmatprep.subr.mxu0 0.0
        %1725 = vmatpush1.msra.mxu0 0.0
        %1726 = vmatprep.subr.mxu0 0.0
        %1727 = vmatpush1.msra.mxu0 0.0
        %1728 = vmatprep.subr.mxu0 0.0
        %1729 = vmatpush1.msra.mxu0 0.0
        %1730 = vmatprep.subr.mxu0 0.0
        %1731 = vmatpush1.msra.mxu0 0.0
        %1732 = vmatprep.subr.mxu0 0.0
        %1733 = vmatpush1.msra.mxu0 0.0
        %1734 = vmatprep.subr.mxu0 %v1702
        %1735 = vmatpush1.msra.mxu0 %v1699
        %1736 = vmatprep.subr.mxu0 0.0
        %1737 = vmatpush2.msra.mxu0 0.0
        %1738 = vmatprep.subr.mxu0 0.0
        %1739 = vmatpush2.msra.mxu0 0.0
        %1740 = vmatprep.subr.mxu0 0.0
        %1741 = vmatpush2.msra.mxu0 0.0
        %1742 = vmatprep.subr.mxu0 0.0
        %1743 = vmatpush2.msra.mxu0 0.0
        %1744 = vmatprep.subr.mxu0 0.0
        %1745 = vmatpush2.msra.mxu0 0.0
        %1746 = vmatprep.subr.mxu0 0.0
        %1747 = vmatpush2.msra.mxu0 0.0
        %1748 = vmatprep.subr.mxu0 0.0
        %1749 = vmatpush2.msra.mxu0 0.0
        %1750 = vmatprep.subr.mxu0 0.0
        %1751 = vmatpush2.msra.mxu0 0.0
        %1752 = vmatprep.subr.mxu0 0.0
        %1753 = vmatpush2.msra.mxu0 0.0
        %1754 = vmatprep.subr.mxu0 0.0
        %1755 = vmatpush2.msra.mxu0 0.0
        %1756 = vmatprep.subr.mxu0 0.0
        %1757 = vmatpush2.msra.mxu0 0.0
        %1758 = vmatprep.subr.mxu0 0.0
        %1759 = vmatpush2.msra.mxu0 0.0
        %1760 = vmatprep.subr.mxu0 0.0
        %1761 = vmatpush2.msra.mxu0 0.0
        %1762 = vmatprep.subr.mxu0 0.0
        %1763 = vmatpush2.msra.mxu0 0.0
        %1764 = vmatprep.subr.mxu0 0.0
        %1765 = vmatpush2.msra.mxu0 0.0
        %1766 = vmatprep.subr.mxu0 0.0
        %1767 = vmatpush2.msra.mxu0 0.0
        %1768 = vmatprep.mubr.f32.mxu0 0.0
        %1769 = vmatmul.mubr.f32.gmra.mxu0 %v1696
        %v1770 = vpop.f32.mrf.mxu0
        %v1771 = vadd.f32 0.0, %v1770
        %v1772 = vpop.f32.mrf.mxu0
        %v1773 = vadd.f32 0.0, %v1772
        %1774 = vdwg.mxu0
        %v1775 = vadd.f32 %v1684, %v1771
        %v1776 = vadd.f32 %v1685, %v1773
        %1777 = vrot.lane.b32.xlu0 %v1242, 113
        %v1778 = vpop.permute.xlu0 %1777
        %1779 = vrot.lane.b32.xlu0 %v1243, 113
        %v1780 = vpop.permute.xlu0 %1779
        %v1781 = vsel %vm916, %v1778, %v1780
        %v1782 = vsel %vm916, %v1780, %v1778
        %v1783 = vsel %vm923, %v1781, 0.0
        %v1784 = vsel %vm924, %v1782, 0.0
        %1785 = vrot.lane.b32.xlu0 %v220, 104
        %v1786 = vpop.permute.xlu0 %1785
        %v1787 = vsel %vm378, %v1786, 0
        %v1790 = vsel %vm275, %v1783, 0
        %v1793 = vsel %vm275, %v1784, 0
        %1795 = vmatprep.subr.mxu0 0.0
        %1796 = vmatpush1.msra.mxu0 0.0
        %1797 = vmatprep.subr.mxu0 0.0
        %1798 = vmatpush1.msra.mxu0 0.0
        %1799 = vmatprep.subr.mxu0 0.0
        %1800 = vmatpush1.msra.mxu0 0.0
        %1801 = vmatprep.subr.mxu0 0.0
        %1802 = vmatpush1.msra.mxu0 0.0
        %1803 = vmatprep.subr.mxu0 0.0
        %1804 = vmatpush1.msra.mxu0 0.0
        %1805 = vmatprep.subr.mxu0 0.0
        %1806 = vmatpush1.msra.mxu0 0.0
        %1807 = vmatprep.subr.mxu0 0.0
        %1808 = vmatpush1.msra.mxu0 0.0
        %1809 = vmatprep.subr.mxu0 0.0
        %1810 = vmatpush1.msra.mxu0 0.0
        %1811 = vmatprep.subr.mxu0 0.0
        %1812 = vmatpush1.msra.mxu0 0.0
        %1813 = vmatprep.subr.mxu0 0.0
        %1814 = vmatpush1.msra.mxu0 0.0
        %1815 = vmatprep.subr.mxu0 0.0
        %1816 = vmatpush1.msra.mxu0 0.0
        %1817 = vmatprep.subr.mxu0 0.0
        %1818 = vmatpush1.msra.mxu0 0.0
        %1819 = vmatprep.subr.mxu0 0.0
        %1820 = vmatpush1.msra.mxu0 0.0
        %1821 = vmatprep.subr.mxu0 0.0
        %1822 = vmatpush1.msra.mxu0 0.0
        %1823 = vmatprep.subr.mxu0 0.0
        %1824 = vmatpush1.msra.mxu0 0.0
        %1825 = vmatprep.subr.mxu0 %v1793
        %1826 = vmatpush1.msra.mxu0 %v1790
        %1827 = vmatprep.subr.mxu0 0.0
        %1828 = vmatpush2.msra.mxu0 0.0
        %1829 = vmatprep.subr.mxu0 0.0
        %1830 = vmatpush2.msra.mxu0 0.0
        %1831 = vmatprep.subr.mxu0 0.0
        %1832 = vmatpush2.msra.mxu0 0.0
        %1833 = vmatprep.subr.mxu0 0.0
        %1834 = vmatpush2.msra.mxu0 0.0
        %1835 = vmatprep.subr.mxu0 0.0
        %1836 = vmatpush2.msra.mxu0 0.0
        %1837 = vmatprep.subr.mxu0 0.0
        %1838 = vmatpush2.msra.mxu0 0.0
        %1839 = vmatprep.subr.mxu0 0.0
        %1840 = vmatpush2.msra.mxu0 0.0
        %1841 = vmatprep.subr.mxu0 0.0
        %1842 = vmatpush2.msra.mxu0 0.0
        %1843 = vmatprep.subr.mxu0 0.0
        %1844 = vmatpush2.msra.mxu0 0.0
        %1845 = vmatprep.subr.mxu0 0.0
        %1846 = vmatpush2.msra.mxu0 0.0
        %1847 = vmatprep.subr.mxu0 0.0
        %1848 = vmatpush2.msra.mxu0 0.0
        %1849 = vmatprep.subr.mxu0 0.0
        %1850 = vmatpush2.msra.mxu0 0.0
        %1851 = vmatprep.subr.mxu0 0.0
        %1852 = vmatpush2.msra.mxu0 0.0
        %1853 = vmatprep.subr.mxu0 0.0
        %1854 = vmatpush2.msra.mxu0 0.0
        %1855 = vmatprep.subr.mxu0 0.0
        %1856 = vmatpush2.msra.mxu0 0.0
        %1857 = vmatprep.subr.mxu0 0.0
        %1858 = vmatpush2.msra.mxu0 0.0
        %1859 = vmatprep.mubr.f32.mxu0 0.0
        %1860 = vmatmul.mubr.f32.gmra.mxu0 %v1787
        %v1861 = vpop.f32.mrf.mxu0
        %v1862 = vadd.f32 0.0, %v1861
        %v1863 = vpop.f32.mrf.mxu0
        %v1864 = vadd.f32 0.0, %v1863
        %1865 = vdwg.mxu0
        %v1866 = vadd.f32 %v1775, %v1862
        %v1867 = vadd.f32 %v1776, %v1864
        %1868 = vrot.lane.b32.xlu0 %v1242, 112
        %v1869 = vpop.permute.xlu0 %1868
        %1870 = vrot.lane.b32.xlu0 %v1243, 112
        %v1871 = vpop.permute.xlu0 %1870
        %v1872 = vsel %vm1014, %v1869, %v1871
        %v1873 = vsel %vm1014, %v1871, %v1869
        %v1874 = vsel %vm1021, %v1872, 0.0
        %v1875 = vsel %vm1022, %v1873, 0.0
        %1876 = vrot.lane.b32.xlu0 %v220, 100
        %v1877 = vpop.permute.xlu0 %1876
        %v1878 = vsel %vm378, %v1877, 0
        %v1881 = vsel %vm275, %v1874, 0
        %v1884 = vsel %vm275, %v1875, 0
        %1886 = vmatprep.subr.mxu0 0.0
        %1887 = vmatpush1.msra.mxu0 0.0
        %1888 = vmatprep.subr.mxu0 0.0
        %1889 = vmatpush1.msra.mxu0 0.0
        %1890 = vmatprep.subr.mxu0 0.0
        %1891 = vmatpush1.msra.mxu0 0.0
        %1892 = vmatprep.subr.mxu0 0.0
        %1893 = vmatpush1.msra.mxu0 0.0
        %1894 = vmatprep.subr.mxu0 0.0
        %1895 = vmatpush1.msra.mxu0 0.0
        %1896 = vmatprep.subr.mxu0 0.0
        %1897 = vmatpush1.msra.mxu0 0.0
        %1898 = vmatprep.subr.mxu0 0.0
        %1899 = vmatpush1.msra.mxu0 0.0
        %1900 = vmatprep.subr.mxu0 0.0
        %1901 = vmatpush1.msra.mxu0 0.0
        %1902 = vmatprep.subr.mxu0 0.0
        %1903 = vmatpush1.msra.mxu0 0.0
        %1904 = vmatprep.subr.mxu0 0.0
        %1905 = vmatpush1.msra.mxu0 0.0
        %1906 = vmatprep.subr.mxu0 0.0
        %1907 = vmatpush1.msra.mxu0 0.0
        %1908 = vmatprep.subr.mxu0 0.0
        %1909 = vmatpush1.msra.mxu0 0.0
        %1910 = vmatprep.subr.mxu0 0.0
        %1911 = vmatpush1.msra.mxu0 0.0
        %1912 = vmatprep.subr.mxu0 0.0
        %1913 = vmatpush1.msra.mxu0 0.0
        %1914 = vmatprep.subr.mxu0 0.0
        %1915 = vmatpush1.msra.mxu0 0.0
        %1916 = vmatprep.subr.mxu0 %v1884
        %1917 = vmatpush1.msra.mxu0 %v1881
        %1918 = vmatprep.subr.mxu0 0.0
        %1919 = vmatpush2.msra.mxu0 0.0
        %1920 = vmatprep.subr.mxu0 0.0
        %1921 = vmatpush2.msra.mxu0 0.0
        %1922 = vmatprep.subr.mxu0 0.0
        %1923 = vmatpush2.msra.mxu0 0.0
        %1924 = vmatprep.subr.mxu0 0.0
        %1925 = vmatpush2.msra.mxu0 0.0
        %1926 = vmatprep.subr.mxu0 0.0
        %1927 = vmatpush2.msra.mxu0 0.0
        %1928 = vmatprep.subr.mxu0 0.0
        %1929 = vmatpush2.msra.mxu0 0.0
        %1930 = vmatprep.subr.mxu0 0.0
        %1931 = vmatpush2.msra.mxu0 0.0
        %1932 = vmatprep.subr.mxu0 0.0
        %1933 = vmatpush2.msra.mxu0 0.0
        %1934 = vmatprep.subr.mxu0 0.0
        %1935 = vmatpush2.msra.mxu0 0.0
        %1936 = vmatprep.subr.mxu0 0.0
        %1937 = vmatpush2.msra.mxu0 0.0
        %1938 = vmatprep.subr.mxu0 0.0
        %1939 = vmatpush2.msra.mxu0 0.0
        %1940 = vmatprep.subr.mxu0 0.0
        %1941 = vmatpush2.msra.mxu0 0.0
        %1942 = vmatprep.subr.mxu0 0.0
        %1943 = vmatpush2.msra.mxu0 0.0
        %1944 = vmatprep.subr.mxu0 0.0
        %1945 = vmatpush2.msra.mxu0 0.0
        %1946 = vmatprep.subr.mxu0 0.0
        %1947 = vmatpush2.msra.mxu0 0.0
        %1948 = vmatprep.subr.mxu0 0.0
        %1949 = vmatpush2.msra.mxu0 0.0
        %1950 = vmatprep.mubr.f32.mxu0 0.0
        %1951 = vmatmul.mubr.f32.gmra.mxu0 %v1878
        %v1952 = vpop.f32.mrf.mxu0
        %v1953 = vadd.f32 0.0, %v1952
        %v1954 = vpop.f32.mrf.mxu0
        %v1955 = vadd.f32 0.0, %v1954
        %1956 = vdwg.mxu0
        %v1957 = vadd.f32 %v1866, %v1953
        %v1958 = vadd.f32 %v1867, %v1955
        %1959 = vrot.lane.b32.xlu0 %v1242, 111
        %v1960 = vpop.permute.xlu0 %1959
        %1961 = vrot.lane.b32.xlu0 %v1243, 111
        %v1962 = vpop.permute.xlu0 %1961
        %v1963 = vsel %vm1112, %v1960, %v1962
        %v1964 = vsel %vm1112, %v1962, %v1960
        %v1965 = vsel %vm1119, %v1963, 0.0
        %v1966 = vsel %vm1120, %v1964, 0.0
        %1967 = vrot.lane.b32.xlu0 %v220, 96
        %v1968 = vpop.permute.xlu0 %1967
        %v1969 = vsel %vm378, %v1968, 0
        %v1972 = vsel %vm275, %v1965, 0
        %v1975 = vsel %vm275, %v1966, 0
        %1977 = vmatprep.subr.mxu0 0.0
        %1978 = vmatpush1.msra.mxu0 0.0
        %1979 = vmatprep.subr.mxu0 0.0
        %1980 = vmatpush1.msra.mxu0 0.0
        %1981 = vmatprep.subr.mxu0 0.0
        %1982 = vmatpush1.msra.mxu0 0.0
        %1983 = vmatprep.subr.mxu0 0.0
        %1984 = vmatpush1.msra.mxu0 0.0
        %1985 = vmatprep.subr.mxu0 0.0
        %1986 = vmatpush1.msra.mxu0 0.0
        %1987 = vmatprep.subr.mxu0 0.0
        %1988 = vmatpush1.msra.mxu0 0.0
        %1989 = vmatprep.subr.mxu0 0.0
        %1990 = vmatpush1.msra.mxu0 0.0
        %1991 = vmatprep.subr.mxu0 0.0
        %1992 = vmatpush1.msra.mxu0 0.0
        %1993 = vmatprep.subr.mxu0 0.0
        %1994 = vmatpush1.msra.mxu0 0.0
        %1995 = vmatprep.subr.mxu0 0.0
        %1996 = vmatpush1.msra.mxu0 0.0
        %1997 = vmatprep.subr.mxu0 0.0
        %1998 = vmatpush1.msra.mxu0 0.0
        %1999 = vmatprep.subr.mxu0 0.0
        %2000 = vmatpush1.msra.mxu0 0.0
        %2001 = vmatprep.subr.mxu0 0.0
        %2002 = vmatpush1.msra.mxu0 0.0
        %2003 = vmatprep.subr.mxu0 0.0
        %2004 = vmatpush1.msra.mxu0 0.0
        %2005 = vmatprep.subr.mxu0 0.0
        %2006 = vmatpush1.msra.mxu0 0.0
        %2007 = vmatprep.subr.mxu0 %v1975
        %2008 = vmatpush1.msra.mxu0 %v1972
        %2009 = vmatprep.subr.mxu0 0.0
        %2010 = vmatpush2.msra.mxu0 0.0
        %2011 = vmatprep.subr.mxu0 0.0
        %2012 = vmatpush2.msra.mxu0 0.0
        %2013 = vmatprep.subr.mxu0 0.0
        %2014 = vmatpush2.msra.mxu0 0.0
        %2015 = vmatprep.subr.mxu0 0.0
        %2016 = vmatpush2.msra.mxu0 0.0
        %2017 = vmatprep.subr.mxu0 0.0
        %2018 = vmatpush2.msra.mxu0 0.0
        %2019 = vmatprep.subr.mxu0 0.0
        %2020 = vmatpush2.msra.mxu0 0.0
        %2021 = vmatprep.subr.mxu0 0.0
        %2022 = vmatpush2.msra.mxu0 0.0
        %2023 = vmatprep.subr.mxu0 0.0
        %2024 = vmatpush2.msra.mxu0 0.0
        %2025 = vmatprep.subr.mxu0 0.0
        %2026 = vmatpush2.msra.mxu0 0.0
        %2027 = vmatprep.subr.mxu0 0.0
        %2028 = vmatpush2.msra.mxu0 0.0
        %2029 = vmatprep.subr.mxu0 0.0
        %2030 = vmatpush2.msra.mxu0 0.0
        %2031 = vmatprep.subr.mxu0 0.0
        %2032 = vmatpush2.msra.mxu0 0.0
        %2033 = vmatprep.subr.mxu0 0.0
        %2034 = vmatpush2.msra.mxu0 0.0
        %2035 = vmatprep.subr.mxu0 0.0
        %2036 = vmatpush2.msra.mxu0 0.0
        %2037 = vmatprep.subr.mxu0 0.0
        %2038 = vmatpush2.msra.mxu0 0.0
        %2039 = vmatprep.subr.mxu0 0.0
        %2040 = vmatpush2.msra.mxu0 0.0
        %2041 = vmatprep.mubr.f32.mxu0 0.0
        %2042 = vmatmul.mubr.f32.gmra.mxu0 %v1969
        %v2043 = vpop.f32.mrf.mxu0
        %v2044 = vadd.f32 0.0, %v2043
        %v2045 = vpop.f32.mrf.mxu0
        %v2046 = vadd.f32 0.0, %v2045
        %2047 = vdwg.mxu0
        %v2048 = vadd.f32 %v1957, %v2044
        %v2049 = vadd.f32 %v1958, %v2046
        %v2052 = vcombine.low %v2048, %v2049
        %v2054 = vadd.f32 %v341, %v2052
        %2055 = vst [vmem:[%s213] sm:$0xff] %v2054
        %s2056 = sand.u32 %s97, 1
        %s2057 = scalar_lea.sflag [#allocation4], %s2056
        %s2058 = sand.u32 %s97, 1
        %s2059 = smul.addr %s2058, 8
        %s2060 = scalar_lea.vmem [#allocation8], %s2059
        // Predicated region
        $region45: #{tpu_custom_call.1} parent=31 // pred_check
          %p2061 = pneg %p107
        $region46: #{tpu_custom_call.1} parent=31 // pred_check_branch
          %2063 = sbr.rel (%p2061) target = $region48
        $region47: #{tpu_custom_call.1} parent=31 // pred_region
          %s2064 = smul.u32 2, %s21
          %s2066 = ssub.s32 128, 128
          %2067 = vsyncadd %s2057, %s2066
          %s2068 = smul.addr %s2064, 64
          %s2069 = scalar_lea.hbm %s3, %s2068
          %s2071 = sshll.u32 %s2060, 4
          %s2072 = int_to_ptr.vmem [resolvable:$true] %s2071
          %2074 = dma.vmem_to_hbm [thread:$0]  %s2072, 128, %s2069, %s2057
        $region48: #{tpu_custom_call.1} parent=31 // pred_fallthru
          _
      $region32: #{tpu_custom_call.1} parent=5 // pred_fallthru
        _
      %p2075 = scmp.le.s32.totalorder 2, %s16
      // Predicated region
      $region49: #{tpu_custom_call.1} parent=5 // pred_check
        %p2076 = pneg %p2075
      $region50: #{tpu_custom_call.1} parent=5 // pred_check_branch
        %2078 = sbr.rel (%p2076) target = $region52
      $region51: #{tpu_custom_call.1} parent=5 // pred_region
        %s2079 = ssub.s32 %s16, 2
        // Predicated region
        $region53: #{tpu_custom_call.1} parent=51 // pred_check
          %p2080 = pneg %p113
        $region54: #{tpu_custom_call.1} parent=51 // pred_check_branch
          %2082 = sbr.rel (%p2080) target = $region56
        $region55: #{tpu_custom_call.1} parent=51 // pred_region
          %s2083 = sand.u32 %s98, 1
          %s2084 = scalar_lea.sflag [#allocation4], %s2083
          %s2085 = sand.u32 %s98, 1
          %s2086 = smul.addr %s2085, 8
          %s2087 = scalar_lea.vmem [#allocation8], %s2086
          %2088 = dma.done %s2084, 128
        $region56: #{tpu_custom_call.1} parent=51 // pred_fallthru
          _
      $region52: #{tpu_custom_call.1} parent=5 // pred_fallthru
        _
    $region6: #{tpu_custom_call.1} parent=1 // loop_footer
      %s20 = sadd.s32 1, %s16
    $region7: #{tpu_custom_call.1} parent=1 // loop_footer_branch
      %15 = sbr.rel target = $region3
    $region8: #{tpu_custom_call.1} parent=1 // loop_exit
      _
    %2089 = vsyncpa [#allocation3], 1
    %s2090 = scalar_lea.sflag [#allocation3], 1
    %2091 = vsyncpa %s2090, 1
    %2092 = vsyncpa [#allocation6], 1
    %2093 = vsyncpa [#allocation4], 1
    %s2094 = scalar_lea.sflag [#allocation4], 1
    %2095 = vsyncpa %s2094, 1

</llo_original>
